<compile_context>
chip_gen: v7x
topology: tpu7x:2x2x1
jax: 0.10.0
libtpu: 0.0.40
codegen_flags: <defaults>
</compile_context>

<pallas_src>
import functools

import jax
import jax.numpy as jnp
from jax.experimental import pallas as pl
from jax.experimental.pallas import tpu as pltpu

f32 = jnp.float32
bf16 = jnp.bfloat16


def _round_up(x, m):
  return ((x + m - 1) // m) * m


def desc_decoder_seq_kernel(
    emb_ref, h10_ref, c10_ref, h20_ref, c20_ref, ctx0_ref,
    key_ref, val_ref, len_ref,
    we1_ref, wc1_ref, wh1_ref, b1_ref,
    wi2_ref, wh2_ref, b2_ref,
    wpo_ref, bpo_ref,
    step_ref, state_ref,
    h1_s, c1_s, h2_s, c2_s, ctx_s,
    *, out_size):
  """One (batch_block, timestep) grid cell of the teacher-forced decoder."""
  H = h10_ref.shape[1]
  P = ctx0_ref.shape[1]
  S = key_ref.shape[1]
  O = out_size
  R = h10_ref.shape[0]
  t = pl.program_id(1)

  # ---- load recurrent state from HBM-provided initial state only at t == 0 ----
  @pl.when(t == 0)
  def _init():
    h1_s[...] = h10_ref[...]
    c1_s[...] = c10_ref[...]
    h2_s[...] = h20_ref[...]
    c2_s[...] = c20_ref[...]
    ctx_s[...] = ctx0_ref[...]

  emb = emb_ref[0]                        # (R, E) bf16
  h1 = h1_s[...]
  c1 = c1_s[...]
  h2 = h2_s[...]
  c2 = c2_s[...]
  ctx = ctx_s[...]

  # ---- LSTMCell 1: three accumulating MXU dots (no lane-concat of sub-128 pieces) ----
  gates1 = jnp.dot(emb, we1_ref[...], preferred_element_type=f32)
  gates1 = gates1 + jnp.dot(ctx.astype(bf16), wc1_ref[...], preferred_element_type=f32)
  gates1 = gates1 + jnp.dot(h1.astype(bf16), wh1_ref[...], preferred_element_type=f32)
  gates1 = gates1 + b1_ref[...]
  i1 = jax.nn.sigmoid(gates1[:, 0:H])
  f1 = jax.nn.sigmoid(gates1[:, H:2 * H])
  g1 = jnp.tanh(gates1[:, 2 * H:3 * H])
  o1 = jax.nn.sigmoid(gates1[:, 3 * H:4 * H])
  c1n = f1 * c1 + i1 * g1
  h1n = o1 * jnp.tanh(c1n)

  # ---- LSTMCell 2: two accumulating MXU dots ----
  gates2 = jnp.dot(h1n.astype(bf16), wi2_ref[...], preferred_element_type=f32)
  gates2 = gates2 + jnp.dot(h2.astype(bf16), wh2_ref[...], preferred_element_type=f32)
  gates2 = gates2 + b2_ref[...]
  i2 = jax.nn.sigmoid(gates2[:, 0:H])
  f2 = jax.nn.sigmoid(gates2[:, H:2 * H])
  g2 = jnp.tanh(gates2[:, 2 * H:3 * H])
  o2 = jax.nn.sigmoid(gates2[:, 3 * H:4 * H])
  c2n = f2 * c2 + i2 * g2
  h2n = o2 * jnp.tanh(c2n)

  # ---- fused AttentionProjection + output head: h2n @ [Wap | Wout]^T ----
  po = jnp.dot(h2n.astype(bf16), wpo_ref[...], preferred_element_type=f32) + bpo_ref[...]
  attn_hidden = po[:, 0:P]
  out = po[:, P:P + O]

  # ---- Attn('dot'): masked dot-product attention, softmax over seq ----
  keyf = key_ref[...].astype(f32)
  valf = val_ref[...].astype(f32)
  scores = jnp.sum(attn_hidden[:, None, :] * keyf, axis=-1)              # (R, S)
  seq_ids = jax.lax.broadcasted_iota(jnp.int32, scores.shape, 1)
  valid = seq_ids < len_ref[...]
  masked = jnp.where(valid, scores, jnp.full_like(scores, -1e30))
  m = jnp.max(masked, axis=-1, keepdims=True)
  e = jnp.exp(masked - m)
  inv = pl.reciprocal(jnp.sum(e, axis=-1, keepdims=True), approx=True)   # EUP slot
  attn_w = e * inv                                                       # (R, S)
  ctx_new = jnp.sum(attn_w[:, :, None] * valf, axis=1)                   # (R, P)

  # ---- carry recurrent state in VMEM for the next timestep ----
  h1_s[...] = h1n
  c1_s[...] = c1n
  h2_s[...] = h2n
  c2_s[...] = c2n
  ctx_s[...] = ctx_new

  # ---- per-step lane-dense packed output slab: [logits | attn_w | pad] ----
  ow = step_ref.shape[-1]
  pad_w = ow - (O + S)
  pieces = [out, attn_w]
  if pad_w:
    pieces.append(jnp.zeros((R, pad_w), f32))
  step_ref[...] = jnp.concatenate(pieces, axis=1)[None]

  # ---- final-state slab written once per batch block ----
  @pl.when(t == pl.num_programs(1) - 1)
  def _final():
    sw = state_ref.shape[-1]
    spad = sw - (4 * H + P)
    sp = [h1n, h2n, c1n, c2n, ctx_new]
    if spad:
      sp.append(jnp.zeros((R, spad), f32))
    state_ref[...] = jnp.concatenate(sp, axis=1)


def init_params(key, input_size, embedding_size, hidden_size, output_size, proj_size):
  ks = jax.random.split(key, 16)
  H, E, P, V, O = hidden_size, embedding_size, proj_size, input_size, output_size
  s = 0.1
  params = dict(
      embedding=jax.random.normal(ks[0], (V, E), jnp.float32),
      w_ih1=s * jax.random.normal(ks[1], (4 * H, E + P), jnp.float32),
      w_hh1=s * jax.random.normal(ks[2], (4 * H, H), jnp.float32),
      b_ih1=s * jax.random.normal(ks[3], (4 * H,), jnp.float32),
      b_hh1=s * jax.random.normal(ks[4], (4 * H,), jnp.float32),
      w_ih2=s * jax.random.normal(ks[5], (4 * H, H), jnp.float32),
      w_hh2=s * jax.random.normal(ks[6], (4 * H, H), jnp.float32),
      b_ih2=s * jax.random.normal(ks[7], (4 * H,), jnp.float32),
      b_hh2=s * jax.random.normal(ks[8], (4 * H,), jnp.float32),
      w_out=s * jax.random.normal(ks[9], (O, H), jnp.float32),
      b_out=s * jax.random.normal(ks[10], (O,), jnp.float32),
      w_attnproj=s * jax.random.normal(ks[11], (P, H), jnp.float32),
      b_attnproj=s * jax.random.normal(ks[12], (P,), jnp.float32),
  )
  return params


def desc_decoder_forward_seq(params, tokens, last_hidden, key, value,
                             cell_state, lengths, context, *, row_block=128):
  """Teacher-forced multi-step decode; tokens is (T, B) int32.

  Returns (out_seq (T,B,O), (h1,h2), (c1,c2), attn_seq (T,B,S), context (B,P)).
  """
  T, B = tokens.shape
  H = params["w_hh1"].shape[1]
  E = params["embedding"].shape[1]
  P = params["w_attnproj"].shape[0]
  O = params["w_out"].shape[0]
  S = key.shape[1]

  # 128 is safe on all generations; use 256 alignment on v6e/v7x at production shapes.
  LANE = 128
  GN = _round_up(4 * H, LANE)       # gate matmul N dim
  PO = _round_up(P + O, LANE)       # stacked attnproj|out N dim
  OW = _round_up(O + S, LANE)       # per-step packed output width (lane-dense store)
  SW = _round_up(4 * H + P, LANE)   # final-state packed width

  def pad_cols(a, n):
    return a if a.shape[1] == n else jnp.pad(a, ((0, 0), (0, n - a.shape[1])))

  # --- stacked / fused bf16 weights (f32 biases), N dims padded to the lane tile ---
  we1 = pad_cols(params["w_ih1"][:, :E].T, GN).astype(bf16)                    # (E, GN)
  wc1 = pad_cols(params["w_ih1"][:, E:].T, GN).astype(bf16)                    # (P, GN)
  wh1 = pad_cols(params["w_hh1"].T, GN).astype(bf16)                           # (H, GN)
  b1 = pad_cols((params["b_ih1"] + params["b_hh1"]).reshape(1, -1), GN).astype(f32)
  wi2 = pad_cols(params["w_ih2"].T, GN).astype(bf16)                           # (H, GN)
  wh2 = pad_cols(params["w_hh2"].T, GN).astype(bf16)                           # (H, GN)
  b2 = pad_cols((params["b_ih2"] + params["b_hh2"]).reshape(1, -1), GN).astype(f32)
  wpo = pad_cols(jnp.concatenate([params["w_attnproj"], params["w_out"]], axis=0).T,
                 PO).astype(bf16)                                              # (H, PO)
  bpo = pad_cols(jnp.concatenate([params["b_attnproj"], params["b_out"]]).reshape(1, -1),
                 PO).astype(f32)

  # --- one embedding gather per sequence; streamed activations in bf16 ---
  emb_seq = jnp.take(params["embedding"], tokens, axis=0).astype(bf16)         # (T, B, E)

  # --- row block: full MXU-height tiles at production B, minimal padding at small B ---
  assert row_block % 8 == 0
  R = min(row_block, _round_up(B, 8))
  BP = _round_up(B, R)
  pad_rows = BP - B

  def prow(a, axis=0, val=0):
    if pad_rows == 0:
      return a
    widths = [(0, 0)] * a.ndim
    widths[axis] = (0, pad_rows)
    return jnp.pad(a, widths, constant_values=val)

  # NOTE: this padding happens once per *sequence* (the T loop is folded into the kernel);
  # pick B a multiple of row_block in production to skip the copies entirely.
  emb_p = prow(emb_seq, axis=1)
  h1p = prow(last_hidden[0])
  c1p = prow(cell_state[0])
  h2p = prow(last_hidden[1])
  c2p = prow(cell_state[1])
  ctxp = prow(context)
  keyp = prow(key.astype(bf16))
  valp = prow(value.astype(bf16))
  lenp = prow(lengths.astype(jnp.int32).reshape(B, 1), val=1)  # padded rows: length 1 (sliced away)

  # batch blocks "parallel" (keep even for v7x's two TensorCores), time "arbitrary" (state carry)
  grid = (BP // R, T)
  row2 = lambda b, t: (b, 0)
  row3 = lambda b, t: (b, 0, 0)
  seq3 = lambda b, t: (t, b, 0)
  cst2 = lambda b, t: (0, 0)

  in_specs = [
      pl.BlockSpec((1, R, E), seq3),
      pl.BlockSpec((R, H), row2),
      pl.BlockSpec((R, H), row2),
      pl.BlockSpec((R, H), row2),
      pl.BlockSpec((R, H), row2),
      pl.BlockSpec((R, P), row2),
      pl.BlockSpec((R, S, P), row3),
      pl.BlockSpec((R, S, P), row3),
      pl.BlockSpec((R, 1), row2),
      # weights / biases: constant block index -> DMA'd once, VMEM-resident across the grid.
      # TODO(synk): add pipeline_mode=pl.Buffered(1) on v7x at production H (single-buffer).
      pl.BlockSpec(we1.shape, cst2),
      pl.BlockSpec(wc1.shape, cst2),
      pl.BlockSpec(wh1.shape, cst2),
      pl.BlockSpec(b1.shape, cst2),
      pl.BlockSpec(wi2.shape, cst2),
      pl.BlockSpec(wh2.shape, cst2),
      pl.BlockSpec(b2.shape, cst2),
      pl.BlockSpec(wpo.shape, cst2),
      pl.BlockSpec(bpo.shape, cst2),
  ]
  out_specs = (
      pl.BlockSpec((1, R, OW), seq3),
      pl.BlockSpec((R, SW), row2),
  )
  out_shape = (
      jax.ShapeDtypeStruct((T, BP, OW), f32),
      jax.ShapeDtypeStruct((BP, SW), f32),
  )
  scratch_shapes = [
      pltpu.VMEM((R, H), f32), pltpu.VMEM((R, H), f32),
      pltpu.VMEM((R, H), f32), pltpu.VMEM((R, H), f32),
      pltpu.VMEM((R, P), f32),
  ]

  step_pk, state_pk = pl.pallas_call(
      functools.partial(desc_decoder_seq_kernel, out_size=O),
      out_shape=out_shape,
      grid=grid,
      in_specs=in_specs,
      out_specs=out_specs,
      scratch_shapes=scratch_shapes,
      compiler_params=pltpu.CompilerParams(
          dimension_semantics=("parallel", "arbitrary")),
  )(emb_p, h1p, c1p, h2p, c2p, ctxp, keyp, valp, lenp,
    we1, wc1, wh1, b1, wi2, wh2, b2, wpo, bpo)

  out_seq = step_pk[:, :B, :O]
  attn_seq = step_pk[:, :B, O:O + S]
  st = state_pk[:B]
  h1 = st[:, 0:H]
  h2 = st[:, H:2 * H]
  c1 = st[:, 2 * H:3 * H]
  c2 = st[:, 3 * H:4 * H]
  ctx = st[:, 4 * H:4 * H + P]
  return out_seq, (h1, h2), (c1, c2), attn_seq, ctx


def desc_decoder_forward(params, word_input, last_hidden, key, value,
                         cell_state, lengths, context, *, row_block=128):
  """Single-step forward (matches the original module API): T == 1 through the same kernel."""
  out_seq, hn, cn, attn_seq, ctx = desc_decoder_forward_seq(
      params, word_input[None, :], last_hidden, key, value, cell_state,
      lengths, context, row_block=row_block)
  return out_seq[0], hn, cn, attn_seq[0][:, None, :], ctx


# ----------------------------- pure-JAX reference -----------------------------
def _ref_bdot(x, w):  # x @ w.T with bf16 operands, f32 accumulation (mirrors the kernel)
  return jnp.dot(x.astype(bf16), w.T.astype(bf16), preferred_element_type=f32)


def _ref_lstmcell(x, h, c, w_ih, w_hh, b_ih, b_hh, H):
  g = _ref_bdot(x, w_ih) + b_ih + _ref_bdot(h, w_hh) + b_hh
  i = jax.nn.sigmoid(g[:, :H])
  f = jax.nn.sigmoid(g[:, H:2 * H])
  gg = jnp.tanh(g[:, 2 * H:3 * H])
  o = jax.nn.sigmoid(g[:, 3 * H:])
  cn = f * c + i * gg
  return o * jnp.tanh(cn), cn


def reference_forward_seq(params, tokens, last_hidden, key, value,
                          cell_state, lengths, context):
  H = params["w_hh1"].shape[1]
  # mirror the kernel's intentional bf16 streaming of key/value
  keyb = key.astype(bf16).astype(f32)
  valb = value.astype(bf16).astype(f32)
  h1, h2 = last_hidden
  c1, c2 = cell_state
  ctx = context
  outs, attns = [], []
  for t in range(tokens.shape[0]):
    emb = params["embedding"][tokens[t]]
    rnn_in = jnp.concatenate([emb, ctx], axis=1)
    h1, c1 = _ref_lstmcell(rnn_in, h1, c1, params["w_ih1"], params["w_hh1"],
                           params["b_ih1"], params["b_hh1"], H)
    h2, c2 = _ref_lstmcell(h1, h2, c2, params["w_ih2"], params["w_hh2"],
                           params["b_ih2"], params["b_hh2"], H)
    ah = _ref_bdot(h2, params["w_attnproj"]) + params["b_attnproj"]
    scores = jnp.sum(ah[:, None, :] * keyb, axis=-1)
    mask = jnp.arange(key.shape[1])[None, :] < lengths[:, None]
    masked = jnp.where(mask, scores, -1e30)
    w = jax.nn.softmax(masked, axis=-1)
    ctx = jnp.sum(w[:, :, None] * valb, axis=1)
    out = _ref_bdot(h2, params["w_out"]) + params["b_out"]
    outs.append(out)
    attns.append(w)
  return jnp.stack(outs), (h1, h2), (c1, c2), jnp.stack(attns), ctx


if __name__ == "__main__":
  # small shapes consistent with the module's forward; B=12 (not a multiple of 8) also
  # exercises batch padding; T=5 exercises the folded in-kernel timestep loop.
  B, V, E, H, P, O, S, T = 12, 32, 32, 32, 16, 32, 8, 5

  root = jax.random.PRNGKey(0)
  pk, dk = jax.random.split(root)
  params = init_params(pk, V, E, H, O, P)

  ks = jax.random.split(dk, 10)
  tokens = jax.random.randint(ks[0], (T, B), 0, V)
  h1_in = jax.random.normal(ks[1], (B, H), jnp.float32)
  h2_in = jax.random.normal(ks[2], (B, H), jnp.float32)
  c1_in = jax.random.normal(ks[3], (B, H), jnp.float32)
  c2_in = jax.random.normal(ks[4], (B, H), jnp.float32)
  key_enc = jax.random.normal(ks[5], (B, S, P), jnp.float32)
  val_enc = jax.random.normal(ks[6], (B, S, P), jnp.float32)
  context = jax.random.normal(ks[7], (B, P), jnp.float32)
  lengths = jax.random.randint(ks[8], (B,), 1, S + 1)

  # --- multi-step (T folded into the kernel) ---
  outs = desc_decoder_forward_seq(params, tokens, (h1_in, h2_in), key_enc,
                                  val_enc, (c1_in, c2_in), lengths, context)
  jax.block_until_ready(outs)
  refs = reference_forward_seq(params, tokens, (h1_in, h2_in), key_enc,
                               val_enc, (c1_in, c2_in), lengths, context)

  flat_o = [outs[0], *outs[1], *outs[2], outs[3], outs[4]]
  flat_r = [refs[0], *refs[1], *refs[2], refs[3], refs[4]]
  # tolerance reflects the intentional bf16 weight/activation streaming + approx reciprocal
  for o, r in zip(flat_o, flat_r):
    assert o.shape == r.shape, (o.shape, r.shape)
    assert jnp.allclose(o, r, atol=1e-2, rtol=1e-2), float(jnp.max(jnp.abs(o - r)))

  # --- single-step API (original module forward) through the same kernel with T == 1 ---
  one = desc_decoder_forward(params, tokens[0], (h1_in, h2_in), key_enc,
                             val_enc, (c1_in, c2_in), lengths, context)
  jax.block_until_ready(one)
  ref1 = reference_forward_seq(params, tokens[:1], (h1_in, h2_in), key_enc,
                               val_enc, (c1_in, c2_in), lengths, context)
  flat_o1 = [one[0], *one[1], *one[2], one[3][:, 0, :], one[4]]
  flat_r1 = [ref1[0][0], *ref1[1], *ref1[2], ref1[3][0], ref1[4]]
  for o, r in zip(flat_o1, flat_r1):
    assert o.shape == r.shape, (o.shape, r.shape)
    assert jnp.allclose(o, r, atol=1e-2, rtol=1e-2), float(jnp.max(jnp.abs(o - r)))

  print("KERNEL_OK")
</pallas_src>

<mosaic_0001>
module attributes {stable_mosaic.version = 11 : i64} {
  func.func @desc_decoder_seq_kernel(%arg0: i32, %arg1: i32, %arg2: memref<1x16x32xbf16, #tpu.memory_space<vmem>>, %arg3: memref<16x32xf32, #tpu.memory_space<vmem>>, %arg4: memref<16x32xf32, #tpu.memory_space<vmem>>, %arg5: memref<16x32xf32, #tpu.memory_space<vmem>>, %arg6: memref<16x32xf32, #tpu.memory_space<vmem>>, %arg7: memref<16x16xf32, #tpu.memory_space<vmem>>, %arg8: memref<16x8x16xbf16, #tpu.memory_space<vmem>>, %arg9: memref<16x8x16xbf16, #tpu.memory_space<vmem>>, %arg10: memref<16x1xi32, #tpu.memory_space<vmem>>, %arg11: memref<32x128xbf16, #tpu.memory_space<vmem>>, %arg12: memref<16x128xbf16, #tpu.memory_space<vmem>>, %arg13: memref<32x128xbf16, #tpu.memory_space<vmem>>, %arg14: memref<1x128xf32, #tpu.memory_space<vmem>>, %arg15: memref<32x128xbf16, #tpu.memory_space<vmem>>, %arg16: memref<32x128xbf16, #tpu.memory_space<vmem>>, %arg17: memref<1x128xf32, #tpu.memory_space<vmem>>, %arg18: memref<32x128xbf16, #tpu.memory_space<vmem>>, %arg19: memref<1x128xf32, #tpu.memory_space<vmem>>, %arg20: memref<1x16x128xf32, #tpu.memory_space<vmem>>, %arg21: memref<16x256xf32, #tpu.memory_space<vmem>>, %arg22: memref<16x32xf32, #tpu.memory_space<vmem>>, %arg23: memref<16x32xf32, #tpu.memory_space<vmem>>, %arg24: memref<16x32xf32, #tpu.memory_space<vmem>>, %arg25: memref<16x32xf32, #tpu.memory_space<vmem>>, %arg26: memref<16x16xf32, #tpu.memory_space<vmem>>) attributes {dimension_semantics = [#tpu.dimension_semantics<parallel>, #tpu.dimension_semantics<arbitrary>], iteration_bounds = array<i64: 1, 5>, scalar_prefetch = 0 : i64, scratch_operands = 5 : i64, tpu.core_type = #tpu.core_type<tc>, window_params = [{transform_indices = @transform_0, window_bounds = array<i64: 1, 16, 32>}, {transform_indices = @transform_1, window_bounds = array<i64: 16, 32>}, {transform_indices = @transform_2, window_bounds = array<i64: 16, 32>}, {transform_indices = @transform_3, window_bounds = array<i64: 16, 32>}, {transform_indices = @transform_4, window_bounds = array<i64: 16, 32>}, {transform_indices = @transform_5, window_bounds = array<i64: 16, 16>}, {transform_indices = @transform_6, window_bounds = array<i64: 16, 8, 16>}, {transform_indices = @transform_7, window_bounds = array<i64: 16, 8, 16>}, {transform_indices = @transform_8, window_bounds = array<i64: 16, 1>}, {pipeline_mode = #tpu.pipeline_mode<synchronous>, transform_indices = @transform_9, window_bounds = array<i64: 32, 128>}, {pipeline_mode = #tpu.pipeline_mode<synchronous>, transform_indices = @transform_10, window_bounds = array<i64: 16, 128>}, {pipeline_mode = #tpu.pipeline_mode<synchronous>, transform_indices = @transform_11, window_bounds = array<i64: 32, 128>}, {pipeline_mode = #tpu.pipeline_mode<synchronous>, transform_indices = @transform_12, window_bounds = array<i64: 1, 128>}, {pipeline_mode = #tpu.pipeline_mode<synchronous>, transform_indices = @transform_13, window_bounds = array<i64: 32, 128>}, {pipeline_mode = #tpu.pipeline_mode<synchronous>, transform_indices = @transform_14, window_bounds = array<i64: 32, 128>}, {pipeline_mode = #tpu.pipeline_mode<synchronous>, transform_indices = @transform_15, window_bounds = array<i64: 1, 128>}, {pipeline_mode = #tpu.pipeline_mode<synchronous>, transform_indices = @transform_16, window_bounds = array<i64: 32, 128>}, {pipeline_mode = #tpu.pipeline_mode<synchronous>, transform_indices = @transform_17, window_bounds = array<i64: 1, 128>}, {transform_indices = @transform_18, window_bounds = array<i64: 1, 16, 128>}, {transform_indices = @transform_19, window_bounds = array<i64: 16, 256>}]} {
    %c0_i32 = arith.constant 0 : i32
    %0 = arith.cmpi eq, %arg1, %c0_i32 : i32
    %1 = arith.extui %0 : i1 to i32
    %c0_i32_0 = arith.constant 0 : i32
    %2 = arith.cmpi ne, %1, %c0_i32_0 : i32
    scf.if %2 {
      %c0_70 = arith.constant 0 : index
      %c0_71 = arith.constant 0 : index
      %131 = vector.load %arg3[%c0_70, %c0_71] : memref<16x32xf32, #tpu.memory_space<vmem>>, vector<16x32xf32>
      %c0_72 = arith.constant 0 : index
      %c0_73 = arith.constant 0 : index
      %132 = vector.load %arg22[%c0_72, %c0_73] : memref<16x32xf32, #tpu.memory_space<vmem>>, vector<16x32xf32>
      tpu.vector_store %arg22[%c0_72, %c0_73], %131 {strides = array<i32>} : memref<16x32xf32, #tpu.memory_space<vmem>>, vector<16x32xf32>,
      %c0_74 = arith.constant 0 : index
      %c0_75 = arith.constant 0 : index
      %133 = vector.load %arg4[%c0_74, %c0_75] : memref<16x32xf32, #tpu.memory_space<vmem>>, vector<16x32xf32>
      %c0_76 = arith.constant 0 : index
      %c0_77 = arith.constant 0 : index
      %134 = vector.load %arg23[%c0_76, %c0_77] : memref<16x32xf32, #tpu.memory_space<vmem>>, vector<16x32xf32>
      tpu.vector_store %arg23[%c0_76, %c0_77], %133 {strides = array<i32>} : memref<16x32xf32, #tpu.memory_space<vmem>>, vector<16x32xf32>,
      %c0_78 = arith.constant 0 : index
      %c0_79 = arith.constant 0 : index
      %135 = vector.load %arg5[%c0_78, %c0_79] : memref<16x32xf32, #tpu.memory_space<vmem>>, vector<16x32xf32>
      %c0_80 = arith.constant 0 : index
      %c0_81 = arith.constant 0 : index
      %136 = vector.load %arg24[%c0_80, %c0_81] : memref<16x32xf32, #tpu.memory_space<vmem>>, vector<16x32xf32>
      tpu.vector_store %arg24[%c0_80, %c0_81], %135 {strides = array<i32>} : memref<16x32xf32, #tpu.memory_space<vmem>>, vector<16x32xf32>,
      %c0_82 = arith.constant 0 : index
      %c0_83 = arith.constant 0 : index
      %137 = vector.load %arg6[%c0_82, %c0_83] : memref<16x32xf32, #tpu.memory_space<vmem>>, vector<16x32xf32>
      %c0_84 = arith.constant 0 : index
      %c0_85 = arith.constant 0 : index
      %138 = vector.load %arg25[%c0_84, %c0_85] : memref<16x32xf32, #tpu.memory_space<vmem>>, vector<16x32xf32>
      tpu.vector_store %arg25[%c0_84, %c0_85], %137 {strides = array<i32>} : memref<16x32xf32, #tpu.memory_space<vmem>>, vector<16x32xf32>,
      %c0_86 = arith.constant 0 : index
      %c0_87 = arith.constant 0 : index
      %139 = vector.load %arg7[%c0_86, %c0_87] : memref<16x16xf32, #tpu.memory_space<vmem>>, vector<16x16xf32>
      %c0_88 = arith.constant 0 : index
      %c0_89 = arith.constant 0 : index
      %140 = vector.load %arg26[%c0_88, %c0_89] : memref<16x16xf32, #tpu.memory_space<vmem>>, vector<16x16xf32>
      tpu.vector_store %arg26[%c0_88, %c0_89], %139 {strides = array<i32>} : memref<16x16xf32, #tpu.memory_space<vmem>>, vector<16x16xf32>,
    } else {
    }
    %c0 = arith.constant 0 : index
    %c0_1 = arith.constant 0 : index
    %c0_2 = arith.constant 0 : index
    %3 = vector.load %arg2[%c0, %c0_1, %c0_2] : memref<1x16x32xbf16, #tpu.memory_space<vmem>>, vector<1x16x32xbf16>
    %4 = vector.shape_cast %3 : vector<1x16x32xbf16> to vector<16x32xbf16>
    %c0_3 = arith.constant 0 : index
    %c0_4 = arith.constant 0 : index
    %5 = vector.load %arg22[%c0_3, %c0_4] : memref<16x32xf32, #tpu.memory_space<vmem>>, vector<16x32xf32>
    %c0_5 = arith.constant 0 : index
    %c0_6 = arith.constant 0 : index
    %6 = vector.load %arg23[%c0_5, %c0_6] : memref<16x32xf32, #tpu.memory_space<vmem>>, vector<16x32xf32>
    %c0_7 = arith.constant 0 : index
    %c0_8 = arith.constant 0 : index
    %7 = vector.load %arg24[%c0_7, %c0_8] : memref<16x32xf32, #tpu.memory_space<vmem>>, vector<16x32xf32>
    %c0_9 = arith.constant 0 : index
    %c0_10 = arith.constant 0 : index
    %8 = vector.load %arg25[%c0_9, %c0_10] : memref<16x32xf32, #tpu.memory_space<vmem>>, vector<16x32xf32>
    %c0_11 = arith.constant 0 : index
    %c0_12 = arith.constant 0 : index
    %9 = vector.load %arg26[%c0_11, %c0_12] : memref<16x16xf32, #tpu.memory_space<vmem>>, vector<16x16xf32>
    %c0_13 = arith.constant 0 : index
    %c0_14 = arith.constant 0 : index
    %10 = vector.load %arg11[%c0_13, %c0_14] : memref<32x128xbf16, #tpu.memory_space<vmem>>, vector<32x128xbf16>
    %cst = arith.constant dense<0.000000e+00> : vector<16x128xf32>
    %11 = tpu.matmul %4, %10, %cst {dimension_numbers = #tpu.dot_dimension_numbers<[1], [0], [0], [1], [0, 0, 1, 1], [], []>} : vector<16x32xbf16>, vector<32x128xbf16>, vector<16x128xf32> -> vector<16x128xf32>
    %12 = arith.truncf %9 : vector<16x16xf32> to vector<16x16xbf16>
    %c0_15 = arith.constant 0 : index
    %c0_16 = arith.constant 0 : index
    %13 = vector.load %arg12[%c0_15, %c0_16] : memref<16x128xbf16, #tpu.memory_space<vmem>>, vector<16x128xbf16>
    %cst_17 = arith.constant dense<0.000000e+00> : vector<16x128xf32>
    %14 = tpu.matmul %12, %13, %cst_17 {dimension_numbers = #tpu.dot_dimension_numbers<[1], [0], [0], [1], [0, 0, 1, 1], [], []>} : vector<16x16xbf16>, vector<16x128xbf16>, vector<16x128xf32> -> vector<16x128xf32>
    %15 = arith.addf %11, %14 : vector<16x128xf32>
    %16 = arith.truncf %5 : vector<16x32xf32> to vector<16x32xbf16>
    %c0_18 = arith.constant 0 : index
    %c0_19 = arith.constant 0 : index
    %17 = vector.load %arg13[%c0_18, %c0_19] : memref<32x128xbf16, #tpu.memory_space<vmem>>, vector<32x128xbf16>
    %cst_20 = arith.constant dense<0.000000e+00> : vector<16x128xf32>
    %18 = tpu.matmul %16, %17, %cst_20 {dimension_numbers = #tpu.dot_dimension_numbers<[1], [0], [0], [1], [0, 0, 1, 1], [], []>} : vector<16x32xbf16>, vector<32x128xbf16>, vector<16x128xf32> -> vector<16x128xf32>
    %19 = arith.addf %15, %18 : vector<16x128xf32>
    %c0_21 = arith.constant 0 : index
    %c0_22 = arith.constant 0 : index
    %20 = vector.load %arg14[%c0_21, %c0_22] : memref<1x128xf32, #tpu.memory_space<vmem>>, vector<1x128xf32>
    %21 = vector.broadcast %20 : vector<1x128xf32> to vector<16x128xf32>
    %22 = arith.addf %19, %21 : vector<16x128xf32>
    %23 = vector.extract_strided_slice %22 {offsets = [0, 0], sizes = [16, 32], strides = [1, 1]} : vector<16x128xf32> to vector<16x32xf32>
    %24 = arith.negf %23 : vector<16x32xf32>
    %25 = math.exp %24 : vector<16x32xf32>
    %cst_23 = arith.constant 1.000000e+00 : f32
    %26 = vector.broadcast %cst_23 : f32 to vector<16x32xf32>
    %27 = arith.addf %26, %25 : vector<16x32xf32>
    %28 = arith.divf %26, %27 : vector<16x32xf32>
    %29 = vector.extract_strided_slice %22 {offsets = [0, 32], sizes = [16, 32], strides = [1, 1]} : vector<16x128xf32> to vector<16x32xf32>
    %30 = arith.negf %29 : vector<16x32xf32>
    %31 = math.exp %30 : vector<16x32xf32>
    %cst_24 = arith.constant 1.000000e+00 : f32
    %32 = vector.broadcast %cst_24 : f32 to vector<16x32xf32>
    %33 = arith.addf %32, %31 : vector<16x32xf32>
    %34 = arith.divf %32, %33 : vector<16x32xf32>
    %35 = vector.extract_strided_slice %22 {offsets = [0, 64], sizes = [16, 32], strides = [1, 1]} : vector<16x128xf32> to vector<16x32xf32>
    %36 = math.tanh %35 : vector<16x32xf32>
    %37 = vector.extract_strided_slice %22 {offsets = [0, 96], sizes = [16, 32], strides = [1, 1]} : vector<16x128xf32> to vector<16x32xf32>
    %38 = arith.negf %37 : vector<16x32xf32>
    %39 = math.exp %38 : vector<16x32xf32>
    %cst_25 = arith.constant 1.000000e+00 : f32
    %40 = vector.broadcast %cst_25 : f32 to vector<16x32xf32>
    %41 = arith.addf %40, %39 : vector<16x32xf32>
    %42 = arith.divf %40, %41 : vector<16x32xf32>
    %43 = arith.mulf %34, %6 : vector<16x32xf32>
    %44 = arith.mulf %28, %36 : vector<16x32xf32>
    %45 = arith.addf %43, %44 : vector<16x32xf32>
    %46 = math.tanh %45 : vector<16x32xf32>
    %47 = arith.mulf %42, %46 : vector<16x32xf32>
    %48 = arith.truncf %47 : vector<16x32xf32> to vector<16x32xbf16>
    %c0_26 = arith.constant 0 : index
    %c0_27 = arith.constant 0 : index
    %49 = vector.load %arg15[%c0_26, %c0_27] : memref<32x128xbf16, #tpu.memory_space<vmem>>, vector<32x128xbf16>
    %cst_28 = arith.constant dense<0.000000e+00> : vector<16x128xf32>
    %50 = tpu.matmul %48, %49, %cst_28 {dimension_numbers = #tpu.dot_dimension_numbers<[1], [0], [0], [1], [0, 0, 1, 1], [], []>} : vector<16x32xbf16>, vector<32x128xbf16>, vector<16x128xf32> -> vector<16x128xf32>
    %51 = arith.truncf %7 : vector<16x32xf32> to vector<16x32xbf16>
    %c0_29 = arith.constant 0 : index
    %c0_30 = arith.constant 0 : index
    %52 = vector.load %arg16[%c0_29, %c0_30] : memref<32x128xbf16, #tpu.memory_space<vmem>>, vector<32x128xbf16>
    %cst_31 = arith.constant dense<0.000000e+00> : vector<16x128xf32>
    %53 = tpu.matmul %51, %52, %cst_31 {dimension_numbers = #tpu.dot_dimension_numbers<[1], [0], [0], [1], [0, 0, 1, 1], [], []>} : vector<16x32xbf16>, vector<32x128xbf16>, vector<16x128xf32> -> vector<16x128xf32>
    %54 = arith.addf %50, %53 : vector<16x128xf32>
    %c0_32 = arith.constant 0 : index
    %c0_33 = arith.constant 0 : index
    %55 = vector.load %arg17[%c0_32, %c0_33] : memref<1x128xf32, #tpu.memory_space<vmem>>, vector<1x128xf32>
    %56 = vector.broadcast %55 : vector<1x128xf32> to vector<16x128xf32>
    %57 = arith.addf %54, %56 : vector<16x128xf32>
    %58 = vector.extract_strided_slice %57 {offsets = [0, 0], sizes = [16, 32], strides = [1, 1]} : vector<16x128xf32> to vector<16x32xf32>
    %59 = arith.negf %58 : vector<16x32xf32>
    %60 = math.exp %59 : vector<16x32xf32>
    %cst_34 = arith.constant 1.000000e+00 : f32
    %61 = vector.broadcast %cst_34 : f32 to vector<16x32xf32>
    %62 = arith.addf %61, %60 : vector<16x32xf32>
    %63 = arith.divf %61, %62 : vector<16x32xf32>
    %64 = vector.extract_strided_slice %57 {offsets = [0, 32], sizes = [16, 32], strides = [1, 1]} : vector<16x128xf32> to vector<16x32xf32>
    %65 = arith.negf %64 : vector<16x32xf32>
    %66 = math.exp %65 : vector<16x32xf32>
    %cst_35 = arith.constant 1.000000e+00 : f32
    %67 = vector.broadcast %cst_35 : f32 to vector<16x32xf32>
    %68 = arith.addf %67, %66 : vector<16x32xf32>
    %69 = arith.divf %67, %68 : vector<16x32xf32>
    %70 = vector.extract_strided_slice %57 {offsets = [0, 64], sizes = [16, 32], strides = [1, 1]} : vector<16x128xf32> to vector<16x32xf32>
    %71 = math.tanh %70 : vector<16x32xf32>
    %72 = vector.extract_strided_slice %57 {offsets = [0, 96], sizes = [16, 32], strides = [1, 1]} : vector<16x128xf32> to vector<16x32xf32>
    %73 = arith.negf %72 : vector<16x32xf32>
    %74 = math.exp %73 : vector<16x32xf32>
    %cst_36 = arith.constant 1.000000e+00 : f32
    %75 = vector.broadcast %cst_36 : f32 to vector<16x32xf32>
    %76 = arith.addf %75, %74 : vector<16x32xf32>
    %77 = arith.divf %75, %76 : vector<16x32xf32>
    %78 = arith.mulf %69, %8 : vector<16x32xf32>
    %79 = arith.mulf %63, %71 : vector<16x32xf32>
    %80 = arith.addf %78, %79 : vector<16x32xf32>
    %81 = math.tanh %80 : vector<16x32xf32>
    %82 = arith.mulf %77, %81 : vector<16x32xf32>
    %83 = arith.truncf %82 : vector<16x32xf32> to vector<16x32xbf16>
    %c0_37 = arith.constant 0 : index
    %c0_38 = arith.constant 0 : index
    %84 = vector.load %arg18[%c0_37, %c0_38] : memref<32x128xbf16, #tpu.memory_space<vmem>>, vector<32x128xbf16>
    %cst_39 = arith.constant dense<0.000000e+00> : vector<16x128xf32>
    %85 = tpu.matmul %83, %84, %cst_39 {dimension_numbers = #tpu.dot_dimension_numbers<[1], [0], [0], [1], [0, 0, 1, 1], [], []>} : vector<16x32xbf16>, vector<32x128xbf16>, vector<16x128xf32> -> vector<16x128xf32>
    %c0_40 = arith.constant 0 : index
    %c0_41 = arith.constant 0 : index
    %86 = vector.load %arg19[%c0_40, %c0_41] : memref<1x128xf32, #tpu.memory_space<vmem>>, vector<1x128xf32>
    %87 = vector.broadcast %86 : vector<1x128xf32> to vector<16x128xf32>
    %88 = arith.addf %85, %87 : vector<16x128xf32>
    %89 = vector.extract_strided_slice %88 {offsets = [0, 0], sizes = [16, 16], strides = [1, 1]} : vector<16x128xf32> to vector<16x16xf32>
    %90 = vector.extract_strided_slice %88 {offsets = [0, 16], sizes = [16, 32], strides = [1, 1]} : vector<16x128xf32> to vector<16x32xf32>
    %c0_42 = arith.constant 0 : index
    %c0_43 = arith.constant 0 : index
    %c0_44 = arith.constant 0 : index
    %91 = vector.load %arg8[%c0_42, %c0_43, %c0_44] : memref<16x8x16xbf16, #tpu.memory_space<vmem>>, vector<16x8x16xbf16>
    %92 = arith.extf %91 : vector<16x8x16xbf16> to vector<16x8x16xf32>
    %c0_45 = arith.constant 0 : index
    %c0_46 = arith.constant 0 : index
    %c0_47 = arith.constant 0 : index
    %93 = vector.load %arg9[%c0_45, %c0_46, %c0_47] : memref<16x8x16xbf16, #tpu.memory_space<vmem>>, vector<16x8x16xbf16>
    %94 = arith.extf %93 : vector<16x8x16xbf16> to vector<16x8x16xf32>
    %95 = vector.shape_cast %89 : vector<16x16xf32> to vector<16x1x16xf32>
    %96 = vector.broadcast %95 : vector<16x1x16xf32> to vector<16x8x16xf32>
    %97 = arith.mulf %96, %92 : vector<16x8x16xf32>
    %cst_48 = arith.constant dense<0.000000e+00> : vector<16x8xf32>
    %98 = vector.multi_reduction <add>, %97, %cst_48 [2] : vector<16x8x16xf32> to vector<16x8xf32>
    %99 = tpu.iota {dimensions = array<i32: 1>} : vector<16x8xi32>
    %c0_49 = arith.constant 0 : index
    %c0_50 = arith.constant 0 : index
    %100 = vector.load %arg10[%c0_49, %c0_50] : memref<16x1xi32, #tpu.memory_space<vmem>>, vector<16x1xi32>
    %101 = vector.broadcast %100 : vector<16x1xi32> to vector<16x8xi32>
    %102 = arith.cmpi slt, %99, %101 : vector<16x8xi32>
    %cst_51 = arith.constant -1.000000e+30 : f32
    %103 = vector.broadcast %cst_51 : f32 to vector<16x8xf32>
    %104 = arith.select %102, %98, %103 : vector<16x8xi1>, vector<16x8xf32>
    %cst_52 = arith.constant dense<0xFF800000> : vector<16xf32>
    %105 = vector.multi_reduction <maximumf>, %104, %cst_52 [1] : vector<16x8xf32> to vector<16xf32>
    %106 = vector.shape_cast %105 : vector<16xf32> to vector<16x1xf32>
    %107 = vector.broadcast %106 : vector<16x1xf32> to vector<16x8xf32>
    %108 = arith.subf %104, %107 : vector<16x8xf32>
    %109 = math.exp %108 : vector<16x8xf32>
    %cst_53 = arith.constant dense<0.000000e+00> : vector<16xf32>
    %110 = vector.multi_reduction <add>, %109, %cst_53 [1] : vector<16x8xf32> to vector<16xf32>
    %111 = vector.shape_cast %110 : vector<16xf32> to vector<16x1xf32>
    %112 = tpu.reciprocal %111 {approx = true} : vector<16x1xf32> -> vector<16x1xf32>
    %113 = vector.broadcast %112 : vector<16x1xf32> to vector<16x8xf32>
    %114 = arith.mulf %109, %113 : vector<16x8xf32>
    %115 = vector.shape_cast %114 : vector<16x8xf32> to vector<16x8x1xf32>
    %116 = vector.broadcast %115 : vector<16x8x1xf32> to vector<16x8x16xf32>
    %117 = arith.mulf %116, %94 : vector<16x8x16xf32>
    %cst_54 = arith.constant dense<0.000000e+00> : vector<16x16xf32>
    %118 = vector.multi_reduction <add>, %117, %cst_54 [1] : vector<16x8x16xf32> to vector<16x16xf32>
    %c0_55 = arith.constant 0 : index
    %c0_56 = arith.constant 0 : index
    %119 = vector.load %arg22[%c0_55, %c0_56] : memref<16x32xf32, #tpu.memory_space<vmem>>, vector<16x32xf32>
    tpu.vector_store %arg22[%c0_55, %c0_56], %47 {strides = array<i32>} : memref<16x32xf32, #tpu.memory_space<vmem>>, vector<16x32xf32>,
    %c0_57 = arith.constant 0 : index
    %c0_58 = arith.constant 0 : index
    %120 = vector.load %arg23[%c0_57, %c0_58] : memref<16x32xf32, #tpu.memory_space<vmem>>, vector<16x32xf32>
    tpu.vector_store %arg23[%c0_57, %c0_58], %45 {strides = array<i32>} : memref<16x32xf32, #tpu.memory_space<vmem>>, vector<16x32xf32>,
    %c0_59 = arith.constant 0 : index
    %c0_60 = arith.constant 0 : index
    %121 = vector.load %arg24[%c0_59, %c0_60] : memref<16x32xf32, #tpu.memory_space<vmem>>, vector<16x32xf32>
    tpu.vector_store %arg24[%c0_59, %c0_60], %82 {strides = array<i32>} : memref<16x32xf32, #tpu.memory_space<vmem>>, vector<16x32xf32>,
    %c0_61 = arith.constant 0 : index
    %c0_62 = arith.constant 0 : index
    %122 = vector.load %arg25[%c0_61, %c0_62] : memref<16x32xf32, #tpu.memory_space<vmem>>, vector<16x32xf32>
    tpu.vector_store %arg25[%c0_61, %c0_62], %80 {strides = array<i32>} : memref<16x32xf32, #tpu.memory_space<vmem>>, vector<16x32xf32>,
    %c0_63 = arith.constant 0 : index
    %c0_64 = arith.constant 0 : index
    %123 = vector.load %arg26[%c0_63, %c0_64] : memref<16x16xf32, #tpu.memory_space<vmem>>, vector<16x16xf32>
    tpu.vector_store %arg26[%c0_63, %c0_64], %118 {strides = array<i32>} : memref<16x16xf32, #tpu.memory_space<vmem>>, vector<16x16xf32>,
    %cst_65 = arith.constant 0.000000e+00 : f32
    %124 = vector.broadcast %cst_65 : f32 to vector<16x88xf32>
    %125 = tpu.concatenate %90, %114, %124 in 1 : vector<16x32xf32>, vector<16x8xf32>, vector<16x88xf32> -> vector<16x128xf32>
    %126 = vector.shape_cast %125 : vector<16x128xf32> to vector<1x16x128xf32>
    %c0_66 = arith.constant 0 : index
    %c0_67 = arith.constant 0 : index
    %c0_68 = arith.constant 0 : index
    %127 = vector.load %arg20[%c0_66, %c0_67, %c0_68] : memref<1x16x128xf32, #tpu.memory_space<vmem>>, vector<1x16x128xf32>
    tpu.vector_store %arg20[%c0_66, %c0_67, %c0_68], %126 {strides = array<i32>} : memref<1x16x128xf32, #tpu.memory_space<vmem>>, vector<1x16x128xf32>,
    %c4_i32 = arith.constant 4 : i32
    %128 = arith.cmpi eq, %arg1, %c4_i32 : i32
    %129 = arith.extui %128 : i1 to i32
    %c0_i32_69 = arith.constant 0 : i32
    %130 = arith.cmpi ne, %129, %c0_i32_69 : i32
    scf.if %130 {
      %cst_70 = arith.constant 0.000000e+00 : f32
      %131 = vector.broadcast %cst_70 : f32 to vector<16x112xf32>
      %132 = tpu.concatenate %47, %82, %45, %80, %118, %131 in 1 : vector<16x32xf32>, vector<16x32xf32>, vector<16x32xf32>, vector<16x32xf32>, vector<16x16xf32>, vector<16x112xf32> -> vector<16x256xf32>
      %c0_71 = arith.constant 0 : index
      %c0_72 = arith.constant 0 : index
      %133 = vector.load %arg21[%c0_71, %c0_72] : memref<16x256xf32, #tpu.memory_space<vmem>>, vector<16x256xf32>
      tpu.vector_store %arg21[%c0_71, %c0_72], %132 {strides = array<i32>} : memref<16x256xf32, #tpu.memory_space<vmem>>, vector<16x256xf32>,
    } else {
    }
    return
  }
  func.func @transform_0(%arg0: i32, %arg1: i32) -> (i32, i32, i32) {
    %c0_i32 = arith.constant 0 : i32
    %c0_i32_0 = arith.constant 0 : i32
    return %arg1, %arg0, %c0_i32 : i32, i32, i32
  }
  func.func @transform_1(%arg0: i32, %arg1: i32) -> (i32, i32) {
    %c0_i32 = arith.constant 0 : i32
    %c0_i32_0 = arith.constant 0 : i32
    return %arg0, %c0_i32 : i32, i32
  }
  func.func @transform_2(%arg0: i32, %arg1: i32) -> (i32, i32) {
    %c0_i32 = arith.constant 0 : i32
    %c0_i32_0 = arith.constant 0 : i32
    return %arg0, %c0_i32 : i32, i32
  }
  func.func @transform_3(%arg0: i32, %arg1: i32) -> (i32, i32) {
    %c0_i32 = arith.constant 0 : i32
    %c0_i32_0 = arith.constant 0 : i32
    return %arg0, %c0_i32 : i32, i32
  }
  func.func @transform_4(%arg0: i32, %arg1: i32) -> (i32, i32) {
    %c0_i32 = arith.constant 0 : i32
    %c0_i32_0 = arith.constant 0 : i32
    return %arg0, %c0_i32 : i32, i32
  }
  func.func @transform_5(%arg0: i32, %arg1: i32) -> (i32, i32) {
    %c0_i32 = arith.constant 0 : i32
    %c0_i32_0 = arith.constant 0 : i32
    return %arg0, %c0_i32 : i32, i32
  }
  func.func @transform_6(%arg0: i32, %arg1: i32) -> (i32, i32, i32) {
    %c0_i32 = arith.constant 0 : i32
    %c0_i32_0 = arith.constant 0 : i32
    %c0_i32_1 = arith.constant 0 : i32
    return %arg0, %c0_i32, %c0_i32_0 : i32, i32, i32
  }
  func.func @transform_7(%arg0: i32, %arg1: i32) -> (i32, i32, i32) {
    %c0_i32 = arith.constant 0 : i32
    %c0_i32_0 = arith.constant 0 : i32
    %c0_i32_1 = arith.constant 0 : i32
    return %arg0, %c0_i32, %c0_i32_0 : i32, i32, i32
  }
  func.func @transform_8(%arg0: i32, %arg1: i32) -> (i32, i32) {
    %c0_i32 = arith.constant 0 : i32
    %c0_i32_0 = arith.constant 0 : i32
    return %arg0, %c0_i32 : i32, i32
  }
  func.func @transform_9(%arg0: i32, %arg1: i32) -> (i32, i32) {
    %c0_i32 = arith.constant 0 : i32
    %c0_i32_0 = arith.constant 0 : i32
    %c0_i32_1 = arith.constant 0 : i32
    return %c0_i32, %c0_i32_0 : i32, i32
  }
  func.func @transform_10(%arg0: i32, %arg1: i32) -> (i32, i32) {
    %c0_i32 = arith.constant 0 : i32
    %c0_i32_0 = arith.constant 0 : i32
    %c0_i32_1 = arith.constant 0 : i32
    return %c0_i32, %c0_i32_0 : i32, i32
  }
  func.func @transform_11(%arg0: i32, %arg1: i32) -> (i32, i32) {
    %c0_i32 = arith.constant 0 : i32
    %c0_i32_0 = arith.constant 0 : i32
    %c0_i32_1 = arith.constant 0 : i32
    return %c0_i32, %c0_i32_0 : i32, i32
  }
  func.func @transform_12(%arg0: i32, %arg1: i32) -> (i32, i32) {
    %c0_i32 = arith.constant 0 : i32
    %c0_i32_0 = arith.constant 0 : i32
    %c0_i32_1 = arith.constant 0 : i32
    return %c0_i32, %c0_i32_0 : i32, i32
  }
  func.func @transform_13(%arg0: i32, %arg1: i32) -> (i32, i32) {
    %c0_i32 = arith.constant 0 : i32
    %c0_i32_0 = arith.constant 0 : i32
    %c0_i32_1 = arith.constant 0 : i32
    return %c0_i32, %c0_i32_0 : i32, i32
  }
  func.func @transform_14(%arg0: i32, %arg1: i32) -> (i32, i32) {
    %c0_i32 = arith.constant 0 : i32
    %c0_i32_0 = arith.constant 0 : i32
    %c0_i32_1 = arith.constant 0 : i32
    return %c0_i32, %c0_i32_0 : i32, i32
  }
  func.func @transform_15(%arg0: i32, %arg1: i32) -> (i32, i32) {
    %c0_i32 = arith.constant 0 : i32
    %c0_i32_0 = arith.constant 0 : i32
    %c0_i32_1 = arith.constant 0 : i32
    return %c0_i32, %c0_i32_0 : i32, i32
  }
  func.func @transform_16(%arg0: i32, %arg1: i32) -> (i32, i32) {
    %c0_i32 = arith.constant 0 : i32
    %c0_i32_0 = arith.constant 0 : i32
    %c0_i32_1 = arith.constant 0 : i32
    return %c0_i32, %c0_i32_0 : i32, i32
  }
  func.func @transform_17(%arg0: i32, %arg1: i32) -> (i32, i32) {
    %c0_i32 = arith.constant 0 : i32
    %c0_i32_0 = arith.constant 0 : i32
    %c0_i32_1 = arith.constant 0 : i32
    return %c0_i32, %c0_i32_0 : i32, i32
  }
  func.func @transform_18(%arg0: i32, %arg1: i32) -> (i32, i32, i32) {
    %c0_i32 = arith.constant 0 : i32
    %c0_i32_0 = arith.constant 0 : i32
    return %arg1, %arg0, %c0_i32 : i32, i32, i32
  }
  func.func @transform_19(%arg0: i32, %arg1: i32) -> (i32, i32) {
    %c0_i32 = arith.constant 0 : i32
    %c0_i32_0 = arith.constant 0 : i32
    return %arg0, %c0_i32 : i32, i32
  }
}

</mosaic_0001>

<llo_original>
// kernel: tpu_custom_call.1
$region0: #{tpu_custom_call.1}
  #allocation0 [shape = 'u32[]', space=smem, size = 0x4, offset = 0x4, fixed_abs, tag = 'smem constant byte address 0x4 - core index']
  #allocation1 [shape = 'u32[144,128]{1,0:T(1,128)}', space=vmem, size = 0x12000, scoped, tag = 'internal scratch']
  #allocation2 [shape = 'f32[16,32]{1,0:T(8,128)}', space=vmem, size = 0x2000, scoped, tag = 'scratch operand']
  #allocation3 [shape = 'f32[16,32]{1,0:T(8,128)}', space=vmem, size = 0x2000, scoped, tag = 'scratch operand']
  #allocation4 [shape = 'f32[16,32]{1,0:T(8,128)}', space=vmem, size = 0x2000, scoped, tag = 'scratch operand']
  #allocation5 [shape = 'f32[16,32]{1,0:T(8,128)}', space=vmem, size = 0x2000, scoped, tag = 'scratch operand']
  #allocation6 [shape = 'f32[16,16]{1,0:T(8,128)}', space=vmem, size = 0x2000, scoped, tag = 'scratch operand']
  %s0 = inlined_call_operand.hbm [shape: bf16[5,16,32], index: 0, kind: input, shape index: {}]
  %s1 = inlined_call_operand.vmem [shape: f32[16,32], index: 1, kind: input, shape index: {}]
  %s2 = inlined_call_operand.hbm [shape: f32[16,32], index: 2, kind: input, shape index: {}]
  %s3 = inlined_call_operand.hbm [shape: f32[16,32], index: 3, kind: input, shape index: {}]
  %s4 = inlined_call_operand.vmem [shape: f32[16,32], index: 4, kind: input, shape index: {}]
  %s5 = inlined_call_operand.hbm [shape: f32[16,16], index: 5, kind: input, shape index: {}]
  %s6 = inlined_call_operand.hbm [shape: bf16[16,8,16], index: 6, kind: input, shape index: {}]
  %s7 = inlined_call_operand.hbm [shape: bf16[16,8,16], index: 7, kind: input, shape index: {}]
  %s8 = inlined_call_operand.vmem [shape: s32[16,1], index: 8, kind: input, shape index: {}]
  %s9 = inlined_call_operand.vmem [shape: bf16[32,128], index: 9, kind: input, shape index: {}]
  %s10 = inlined_call_operand.hbm [shape: bf16[16,128], index: 10, kind: input, shape index: {}]
  %s11 = inlined_call_operand.hbm [shape: bf16[32,128], index: 11, kind: input, shape index: {}]
  %s12 = inlined_call_operand.vmem [shape: f32[1,128], index: 12, kind: input, shape index: {}]
  %s13 = inlined_call_operand.vmem [shape: bf16[32,128], index: 13, kind: input, shape index: {}]
  %s14 = inlined_call_operand.hbm [shape: bf16[32,128], index: 14, kind: input, shape index: {}]
  %s15 = inlined_call_operand.vmem [shape: f32[1,128], index: 15, kind: input, shape index: {}]
  %s16 = inlined_call_operand.hbm [shape: bf16[32,128], index: 16, kind: input, shape index: {}]
  %s17 = inlined_call_operand.vmem [shape: f32[1,128], index: 17, kind: input, shape index: {}]
  %s18 = inlined_call_operand.hbm [shape: f32[5,16,128], index: 18, kind: output, shape index: {0}]
  %s19 = inlined_call_operand.hbm [shape: f32[16,256], index: 19, kind: output, shape index: {1}]
  %20 = xla_tuple %s18, %s19
  %s21 = sld [smem:[#allocation0]]
  $region161: #{tpu_custom_call.1} parent=0
    _
  %s23 = ssub.s32 1, %s21
  %s24 = scalar_select 0, %s23, %s21
  $region1: #{tpu_custom_call.1} parent=0
    #allocation7 [shape = 'u8[8192]{0}', space=vmem, size = 0x2000, scoped, tag = 'input window, operand 0']
    #allocation8 [shape = 's32[2]{0}', space=sflag, size = 0x8, scoped, tag = 'scoped memory for tpu_custom_call.1']
    #allocation9 [shape = 's32[2]{0}', space=sflag, size = 0x8, scoped, tag = 'scoped memory for tpu_custom_call.1']
    #allocation10 [shape = 'u8[8192]{0}', space=vmem, size = 0x2000, scoped, tag = 'input window, operand 2, single buffered']
    #allocation11 [shape = 's32[1]{0}', space=sflag, size = 0x4, scoped, tag = 'scoped memory for tpu_custom_call.1']
    #allocation12 [shape = 'u8[8192]{0}', space=vmem, size = 0x2000, scoped, tag = 'input window, operand 3, single buffered']
    #allocation13 [shape = 'u8[8192]{0}', space=vmem, size = 0x2000, scoped, tag = 'input window, operand 5, single buffered']
    #allocation14 [shape = 's32[1]{0}', space=sflag, size = 0x4, scoped, tag = 'scoped memory for tpu_custom_call.1']
    #allocation15 [shape = 'u8[32768]{0}', space=vmem, size = 0x8000, scoped, tag = 'input window, operand 6, single buffered']
    #allocation16 [shape = 'u8[32768]{0}', space=vmem, size = 0x8000, scoped, tag = 'input window, operand 7, single buffered']
    #allocation17 [shape = 's32[1]{0}', space=sflag, size = 0x4, scoped, tag = 'scoped memory for tpu_custom_call.1']
    #allocation18 [shape = 'u8[4096]{0}', space=vmem, size = 0x1000, scoped, tag = 'input window, operand 10, single buffered']
    #allocation19 [shape = 'u8[8192]{0}', space=vmem, size = 0x2000, scoped, tag = 'input window, operand 11, single buffered']
    #allocation20 [shape = 's32[1]{0}', space=sflag, size = 0x4, scoped, tag = 'scoped memory for tpu_custom_call.1']
    #allocation21 [shape = 'u8[8192]{0}', space=vmem, size = 0x2000, scoped, tag = 'input window, operand 14, single buffered']
    #allocation22 [shape = 'u8[8192]{0}', space=vmem, size = 0x2000, scoped, tag = 'input window, operand 16, single buffered']
    #allocation23 [shape = 's32[1]{0}', space=sflag, size = 0x4, scoped, tag = 'scoped memory for tpu_custom_call.1']
    #allocation24 [shape = 'u8[16384]{0}', space=vmem, size = 0x4000, scoped, tag = 'output window, operand 0']
    #allocation25 [shape = 'u8[16384]{0}', space=vmem, size = 0x4000, scoped, tag = 'output window, operand 1, single buffered']
    #allocation26 [shape = 's32[1]{0}', space=sflag, size = 0x4, scoped, tag = 'scoped memory for tpu_custom_call.1']
    %25 = vsyncpa [#allocation8], 0
    %s26 = scalar_lea.sflag [#allocation8], 1
    %27 = vsyncpa %s26, 0
    %28 = vsyncpa [#allocation11], 0
    %29 = vsyncpa [#allocation14], 0
    %30 = vsyncpa [#allocation17], 0
    %31 = vsyncpa [#allocation20], 0
    %32 = vsyncpa [#allocation23], 0
    %33 = vsyncpa [#allocation9], 0
    %s34 = scalar_lea.sflag [#allocation9], 1
    %35 = vsyncpa %s34, 0
    %36 = vsyncpa [#allocation26], 0
    loop: start=0, step=1, limit=7
    $region2: #{tpu_custom_call.1} parent=1 // loop_pre_header
      _
    $region3: #{tpu_custom_call.1} parent=1 // loop_header
      %s38 = sphi 0, %s42
      %p39 = scmp.ge.s32.totalorder %s38, 7
      %s45 = sphi 0, %s57
      %s46 = sphi 0, %s53
      %s47 = sphi 0, %s45
      %s48 = sphi 0, %s46
      %s49 = sphi 0, %s47
      %s50 = sphi 0, %s48
      %s62 = sphi 0, %s64
      %s65 = sphi 0, %s62
      %s66 = sphi 0, %s65
      %s82 = sphi 0, %s66
      %s88 = sphi 0, %s90
      %s91 = sphi 0, %s88
      %s92 = sphi 0, %s91
      %s108 = sphi 0, %s92
      %s114 = sphi 0, %s116
      %s117 = sphi 0, %s114
      %s118 = sphi 0, %s117
      %s134 = sphi 0, %s118
      %s140 = sphi 0, %s142
      %s143 = sphi 0, %s140
      %s144 = sphi 0, %s143
      %s160 = sphi 0, %s144
      %s166 = sphi 0, %s168
      %s169 = sphi 0, %s166
      %s170 = sphi 0, %s169
      %s186 = sphi 0, %s170
      %s192 = sphi 0, %s194
      %s195 = sphi 0, %s192
      %s196 = sphi 0, %s195
      %s212 = sphi 0, %s196
      %s218 = sphi 0, %s220
      %s221 = sphi 0, %s218
      %s222 = sphi 0, %s221
      %s238 = sphi 0, %s222
      %s244 = sphi 0, %s246
      %s247 = sphi 0, %s244
      %s248 = sphi 0, %s247
      %s264 = sphi 0, %s248
      %s270 = sphi 0, %s272
      %s273 = sphi 0, %s270
      %s274 = sphi 0, %s273
      %s290 = sphi 0, %s274
      %s294 = sphi 0, %s294
      %s296 = sphi 0, %s294
      %s297 = sphi 0, %s296
      %s311 = sphi 0, %s297
      %s315 = sphi 0, %s315
      %s317 = sphi 0, %s315
      %s318 = sphi 0, %s317
      %s332 = sphi 0, %s318
      %s336 = sphi 0, %s336
      %s338 = sphi 0, %s336
      %s339 = sphi 0, %s338
      %s353 = sphi 0, %s339
      %s357 = sphi 0, %s357
      %s359 = sphi 0, %s357
      %s360 = sphi 0, %s359
      %s374 = sphi 0, %s360
      %s378 = sphi 0, %s378
      %s380 = sphi 0, %s378
      %s381 = sphi 0, %s380
      %s395 = sphi 0, %s381
      %s399 = sphi 0, %s399
      %s401 = sphi 0, %s399
      %s402 = sphi 0, %s401
      %s416 = sphi 0, %s402
      %s420 = sphi 0, %s420
      %s422 = sphi 0, %s420
      %s423 = sphi 0, %s422
      %s437 = sphi 0, %s423
      %s441 = sphi 0, %s441
      %s443 = sphi 0, %s441
      %s444 = sphi 0, %s443
      %s458 = sphi 0, %s444
      %s462 = sphi 0, %s462
      %s464 = sphi 0, %s462
      %s465 = sphi 0, %s464
      %s479 = sphi 0, %s465
      %s487 = sphi 0, %s489
      %s490 = sphi 0, %s487
      %s491 = sphi 0, %s490
      %s507 = sphi 0, %s491
      %s513 = sphi 0, %s515
      %s516 = sphi 0, %s513
      %s517 = sphi 0, %s516
      %s533 = sphi 0, %s517
    $region4: #{tpu_custom_call.1} parent=1 // loop_header_branch
      %41 = sbr.rel (%p39) target = $region8
    $region5: #{tpu_custom_call.1} parent=1 // loop_body
      %s43 = ssub.s32 %s38, 1
      %s44 = ssub.s32 %s38, 2
      %s51 = sadd.s32 1, %s46
      %p52 = scmp.ge.s32.totalorder %s51, 5
      %s53 = scalar_select %p52, 0, %s51
      %s54 = sadd.s32 1, %s45
      %s55 = scalar_select %p52, %s54, %s45
      %p56 = scmp.ge.s32.totalorder %s55, 1
      %s57 = scalar_select %p56, 0, %s55
      %s58 = ssub.s32 %s46, %s53
      %s59 = ssub.s32 %s45, %s57
      %s60 = sor.u32 %s58, %s59
      %p61 = scmp.eq.s32.totalorder %s60, 0
      %s63 = sadd.s32 %s62, 1
      %s64 = scalar_select %p61, %s62, %s63
      %p67 = pneg %p61
      %p68 = scmp.eq.s32.totalorder %s38, 4
      %p69 = por %p67, %p68
      %p70 = scmp.ne.s32.totalorder %s62, %s65
      %p71 = scmp.eq.s32.totalorder %s38, 0
      %p72 = por %p70, %p71
      %p73 = scmp.ne.s32.totalorder %s62, %s65
      %p74 = scmp.eq.s32.totalorder %s43, 4
      %p75 = por %p73, %p74
      %p76 = scmp.ne.s32.totalorder %s65, %s66
      %p77 = scmp.eq.s32.totalorder %s43, 0
      %p78 = por %p76, %p77
      %p79 = scmp.ne.s32.totalorder %s65, %s66
      %p80 = scmp.eq.s32.totalorder %s44, 4
      %p81 = por %p79, %p80
      %p83 = scmp.ne.s32.totalorder %s66, %s82
      %p84 = scmp.eq.s32.totalorder %s44, 0
      %p85 = por %p83, %p84
      %s86 = ssub.s32 %s45, %s57
      %p87 = scmp.eq.s32.totalorder %s86, 0
      %s89 = sadd.s32 %s88, 1
      %s90 = scalar_select %p87, %s88, %s89
      %p93 = pneg %p87
      %p94 = scmp.eq.s32.totalorder %s38, 4
      %p95 = por %p93, %p94
      %p96 = scmp.ne.s32.totalorder %s88, %s91
      %p97 = scmp.eq.s32.totalorder %s38, 0
      %p98 = por %p96, %p97
      %p99 = scmp.ne.s32.totalorder %s88, %s91
      %p100 = scmp.eq.s32.totalorder %s43, 4
      %p101 = por %p99, %p100
      %p102 = scmp.ne.s32.totalorder %s91, %s92
      %p103 = scmp.eq.s32.totalorder %s43, 0
      %p104 = por %p102, %p103
      %p105 = scmp.ne.s32.totalorder %s91, %s92
      %p106 = scmp.eq.s32.totalorder %s44, 4
      %p107 = por %p105, %p106
      %p109 = scmp.ne.s32.totalorder %s92, %s108
      %p110 = scmp.eq.s32.totalorder %s44, 0
      %p111 = por %p109, %p110
      %s112 = ssub.s32 %s45, %s57
      %p113 = scmp.eq.s32.totalorder %s112, 0
      %s115 = sadd.s32 %s114, 1
      %s116 = scalar_select %p113, %s114, %s115
      %p119 = pneg %p113
      %p120 = scmp.eq.s32.totalorder %s38, 4
      %p121 = por %p119, %p120
      %p122 = scmp.ne.s32.totalorder %s114, %s117
      %p123 = scmp.eq.s32.totalorder %s38, 0
      %p124 = por %p122, %p123
      %p125 = scmp.ne.s32.totalorder %s114, %s117
      %p126 = scmp.eq.s32.totalorder %s43, 4
      %p127 = por %p125, %p126
      %p128 = scmp.ne.s32.totalorder %s117, %s118
      %p129 = scmp.eq.s32.totalorder %s43, 0
      %p130 = por %p128, %p129
      %p131 = scmp.ne.s32.totalorder %s117, %s118
      %p132 = scmp.eq.s32.totalorder %s44, 4
      %p133 = por %p131, %p132
      %p135 = scmp.ne.s32.totalorder %s118, %s134
      %p136 = scmp.eq.s32.totalorder %s44, 0
      %p137 = por %p135, %p136
      %s138 = ssub.s32 %s45, %s57
      %p139 = scmp.eq.s32.totalorder %s138, 0
      %s141 = sadd.s32 %s140, 1
      %s142 = scalar_select %p139, %s140, %s141
      %p145 = pneg %p139
      %p146 = scmp.eq.s32.totalorder %s38, 4
      %p147 = por %p145, %p146
      %p148 = scmp.ne.s32.totalorder %s140, %s143
      %p149 = scmp.eq.s32.totalorder %s38, 0
      %p150 = por %p148, %p149
      %p151 = scmp.ne.s32.totalorder %s140, %s143
      %p152 = scmp.eq.s32.totalorder %s43, 4
      %p153 = por %p151, %p152
      %p154 = scmp.ne.s32.totalorder %s143, %s144
      %p155 = scmp.eq.s32.totalorder %s43, 0
      %p156 = por %p154, %p155
      %p157 = scmp.ne.s32.totalorder %s143, %s144
      %p158 = scmp.eq.s32.totalorder %s44, 4
      %p159 = por %p157, %p158
      %p161 = scmp.ne.s32.totalorder %s144, %s160
      %p162 = scmp.eq.s32.totalorder %s44, 0
      %p163 = por %p161, %p162
      %s164 = ssub.s32 %s45, %s57
      %p165 = scmp.eq.s32.totalorder %s164, 0
      %s167 = sadd.s32 %s166, 1
      %s168 = scalar_select %p165, %s166, %s167
      %p171 = pneg %p165
      %p172 = scmp.eq.s32.totalorder %s38, 4
      %p173 = por %p171, %p172
      %p174 = scmp.ne.s32.totalorder %s166, %s169
      %p175 = scmp.eq.s32.totalorder %s38, 0
      %p176 = por %p174, %p175
      %p177 = scmp.ne.s32.totalorder %s166, %s169
      %p178 = scmp.eq.s32.totalorder %s43, 4
      %p179 = por %p177, %p178
      %p180 = scmp.ne.s32.totalorder %s169, %s170
      %p181 = scmp.eq.s32.totalorder %s43, 0
      %p182 = por %p180, %p181
      %p183 = scmp.ne.s32.totalorder %s169, %s170
      %p184 = scmp.eq.s32.totalorder %s44, 4
      %p185 = por %p183, %p184
      %p187 = scmp.ne.s32.totalorder %s170, %s186
      %p188 = scmp.eq.s32.totalorder %s44, 0
      %p189 = por %p187, %p188
      %s190 = ssub.s32 %s45, %s57
      %p191 = scmp.eq.s32.totalorder %s190, 0
      %s193 = sadd.s32 %s192, 1
      %s194 = scalar_select %p191, %s192, %s193
      %p197 = pneg %p191
      %p198 = scmp.eq.s32.totalorder %s38, 4
      %p199 = por %p197, %p198
      %p200 = scmp.ne.s32.totalorder %s192, %s195
      %p201 = scmp.eq.s32.totalorder %s38, 0
      %p202 = por %p200, %p201
      %p203 = scmp.ne.s32.totalorder %s192, %s195
      %p204 = scmp.eq.s32.totalorder %s43, 4
      %p205 = por %p203, %p204
      %p206 = scmp.ne.s32.totalorder %s195, %s196
      %p207 = scmp.eq.s32.totalorder %s43, 0
      %p208 = por %p206, %p207
      %p209 = scmp.ne.s32.totalorder %s195, %s196
      %p210 = scmp.eq.s32.totalorder %s44, 4
      %p211 = por %p209, %p210
      %p213 = scmp.ne.s32.totalorder %s196, %s212
      %p214 = scmp.eq.s32.totalorder %s44, 0
      %p215 = por %p213, %p214
      %s216 = ssub.s32 %s45, %s57
      %p217 = scmp.eq.s32.totalorder %s216, 0
      %s219 = sadd.s32 %s218, 1
      %s220 = scalar_select %p217, %s218, %s219
      %p223 = pneg %p217
      %p224 = scmp.eq.s32.totalorder %s38, 4
      %p225 = por %p223, %p224
      %p226 = scmp.ne.s32.totalorder %s218, %s221
      %p227 = scmp.eq.s32.totalorder %s38, 0
      %p228 = por %p226, %p227
      %p229 = scmp.ne.s32.totalorder %s218, %s221
      %p230 = scmp.eq.s32.totalorder %s43, 4
      %p231 = por %p229, %p230
      %p232 = scmp.ne.s32.totalorder %s221, %s222
      %p233 = scmp.eq.s32.totalorder %s43, 0
      %p234 = por %p232, %p233
      %p235 = scmp.ne.s32.totalorder %s221, %s222
      %p236 = scmp.eq.s32.totalorder %s44, 4
      %p237 = por %p235, %p236
      %p239 = scmp.ne.s32.totalorder %s222, %s238
      %p240 = scmp.eq.s32.totalorder %s44, 0
      %p241 = por %p239, %p240
      %s242 = ssub.s32 %s45, %s57
      %p243 = scmp.eq.s32.totalorder %s242, 0
      %s245 = sadd.s32 %s244, 1
      %s246 = scalar_select %p243, %s244, %s245
      %p249 = pneg %p243
      %p250 = scmp.eq.s32.totalorder %s38, 4
      %p251 = por %p249, %p250
      %p252 = scmp.ne.s32.totalorder %s244, %s247
      %p253 = scmp.eq.s32.totalorder %s38, 0
      %p254 = por %p252, %p253
      %p255 = scmp.ne.s32.totalorder %s244, %s247
      %p256 = scmp.eq.s32.totalorder %s43, 4
      %p257 = por %p255, %p256
      %p258 = scmp.ne.s32.totalorder %s247, %s248
      %p259 = scmp.eq.s32.totalorder %s43, 0
      %p260 = por %p258, %p259
      %p261 = scmp.ne.s32.totalorder %s247, %s248
      %p262 = scmp.eq.s32.totalorder %s44, 4
      %p263 = por %p261, %p262
      %p265 = scmp.ne.s32.totalorder %s248, %s264
      %p266 = scmp.eq.s32.totalorder %s44, 0
      %p267 = por %p265, %p266
      %s268 = ssub.s32 %s45, %s57
      %p269 = scmp.eq.s32.totalorder %s268, 0
      %s271 = sadd.s32 %s270, 1
      %s272 = scalar_select %p269, %s270, %s271
      %p275 = pneg %p269
      %p276 = scmp.eq.s32.totalorder %s38, 4
      %p277 = por %p275, %p276
      %p278 = scmp.ne.s32.totalorder %s270, %s273
      %p279 = scmp.eq.s32.totalorder %s38, 0
      %p280 = por %p278, %p279
      %p281 = scmp.ne.s32.totalorder %s270, %s273
      %p282 = scmp.eq.s32.totalorder %s43, 4
      %p283 = por %p281, %p282
      %p284 = scmp.ne.s32.totalorder %s273, %s274
      %p285 = scmp.eq.s32.totalorder %s43, 0
      %p286 = por %p284, %p285
      %p287 = scmp.ne.s32.totalorder %s273, %s274
      %p288 = scmp.eq.s32.totalorder %s44, 4
      %p289 = por %p287, %p288
      %p291 = scmp.ne.s32.totalorder %s274, %s290
      %p292 = scmp.eq.s32.totalorder %s44, 0
      %p293 = por %p291, %p292
      %s295 = sadd.s32 %s294, 1
      %p298 = scmp.eq.s32.totalorder %s38, 4
      %p299 = scmp.ne.s32.totalorder %s294, %s296
      %p300 = scmp.eq.s32.totalorder %s38, 0
      %p301 = por %p299, %p300
      %p302 = scmp.ne.s32.totalorder %s294, %s296
      %p303 = scmp.eq.s32.totalorder %s43, 4
      %p304 = por %p302, %p303
      %p305 = scmp.ne.s32.totalorder %s296, %s297
      %p306 = scmp.eq.s32.totalorder %s43, 0
      %p307 = por %p305, %p306
      %p308 = scmp.ne.s32.totalorder %s296, %s297
      %p309 = scmp.eq.s32.totalorder %s44, 4
      %p310 = por %p308, %p309
      %p312 = scmp.ne.s32.totalorder %s297, %s311
      %p313 = scmp.eq.s32.totalorder %s44, 0
      %p314 = por %p312, %p313
      %s316 = sadd.s32 %s315, 1
      %p319 = scmp.eq.s32.totalorder %s38, 4
      %p320 = scmp.ne.s32.totalorder %s315, %s317
      %p321 = scmp.eq.s32.totalorder %s38, 0
      %p322 = por %p320, %p321
      %p323 = scmp.ne.s32.totalorder %s315, %s317
      %p324 = scmp.eq.s32.totalorder %s43, 4
      %p325 = por %p323, %p324
      %p326 = scmp.ne.s32.totalorder %s317, %s318
      %p327 = scmp.eq.s32.totalorder %s43, 0
      %p328 = por %p326, %p327
      %p329 = scmp.ne.s32.totalorder %s317, %s318
      %p330 = scmp.eq.s32.totalorder %s44, 4
      %p331 = por %p329, %p330
      %p333 = scmp.ne.s32.totalorder %s318, %s332
      %p334 = scmp.eq.s32.totalorder %s44, 0
      %p335 = por %p333, %p334
      %s337 = sadd.s32 %s336, 1
      %p340 = scmp.eq.s32.totalorder %s38, 4
      %p341 = scmp.ne.s32.totalorder %s336, %s338
      %p342 = scmp.eq.s32.totalorder %s38, 0
      %p343 = por %p341, %p342
      %p344 = scmp.ne.s32.totalorder %s336, %s338
      %p345 = scmp.eq.s32.totalorder %s43, 4
      %p346 = por %p344, %p345
      %p347 = scmp.ne.s32.totalorder %s338, %s339
      %p348 = scmp.eq.s32.totalorder %s43, 0
      %p349 = por %p347, %p348
      %p350 = scmp.ne.s32.totalorder %s338, %s339
      %p351 = scmp.eq.s32.totalorder %s44, 4
      %p352 = por %p350, %p351
      %p354 = scmp.ne.s32.totalorder %s339, %s353
      %p355 = scmp.eq.s32.totalorder %s44, 0
      %p356 = por %p354, %p355
      %s358 = sadd.s32 %s357, 1
      %p361 = scmp.eq.s32.totalorder %s38, 4
      %p362 = scmp.ne.s32.totalorder %s357, %s359
      %p363 = scmp.eq.s32.totalorder %s38, 0
      %p364 = por %p362, %p363
      %p365 = scmp.ne.s32.totalorder %s357, %s359
      %p366 = scmp.eq.s32.totalorder %s43, 4
      %p367 = por %p365, %p366
      %p368 = scmp.ne.s32.totalorder %s359, %s360
      %p369 = scmp.eq.s32.totalorder %s43, 0
      %p370 = por %p368, %p369
      %p371 = scmp.ne.s32.totalorder %s359, %s360
      %p372 = scmp.eq.s32.totalorder %s44, 4
      %p373 = por %p371, %p372
      %p375 = scmp.ne.s32.totalorder %s360, %s374
      %p376 = scmp.eq.s32.totalorder %s44, 0
      %p377 = por %p375, %p376
      %s379 = sadd.s32 %s378, 1
      %p382 = scmp.eq.s32.totalorder %s38, 4
      %p383 = scmp.ne.s32.totalorder %s378, %s380
      %p384 = scmp.eq.s32.totalorder %s38, 0
      %p385 = por %p383, %p384
      %p386 = scmp.ne.s32.totalorder %s378, %s380
      %p387 = scmp.eq.s32.totalorder %s43, 4
      %p388 = por %p386, %p387
      %p389 = scmp.ne.s32.totalorder %s380, %s381
      %p390 = scmp.eq.s32.totalorder %s43, 0
      %p391 = por %p389, %p390
      %p392 = scmp.ne.s32.totalorder %s380, %s381
      %p393 = scmp.eq.s32.totalorder %s44, 4
      %p394 = por %p392, %p393
      %p396 = scmp.ne.s32.totalorder %s381, %s395
      %p397 = scmp.eq.s32.totalorder %s44, 0
      %p398 = por %p396, %p397
      %s400 = sadd.s32 %s399, 1
      %p403 = scmp.eq.s32.totalorder %s38, 4
      %p404 = scmp.ne.s32.totalorder %s399, %s401
      %p405 = scmp.eq.s32.totalorder %s38, 0
      %p406 = por %p404, %p405
      %p407 = scmp.ne.s32.totalorder %s399, %s401
      %p408 = scmp.eq.s32.totalorder %s43, 4
      %p409 = por %p407, %p408
      %p410 = scmp.ne.s32.totalorder %s401, %s402
      %p411 = scmp.eq.s32.totalorder %s43, 0
      %p412 = por %p410, %p411
      %p413 = scmp.ne.s32.totalorder %s401, %s402
      %p414 = scmp.eq.s32.totalorder %s44, 4
      %p415 = por %p413, %p414
      %p417 = scmp.ne.s32.totalorder %s402, %s416
      %p418 = scmp.eq.s32.totalorder %s44, 0
      %p419 = por %p417, %p418
      %s421 = sadd.s32 %s420, 1
      %p424 = scmp.eq.s32.totalorder %s38, 4
      %p425 = scmp.ne.s32.totalorder %s420, %s422
      %p426 = scmp.eq.s32.totalorder %s38, 0
      %p427 = por %p425, %p426
      %p428 = scmp.ne.s32.totalorder %s420, %s422
      %p429 = scmp.eq.s32.totalorder %s43, 4
      %p430 = por %p428, %p429
      %p431 = scmp.ne.s32.totalorder %s422, %s423
      %p432 = scmp.eq.s32.totalorder %s43, 0
      %p433 = por %p431, %p432
      %p434 = scmp.ne.s32.totalorder %s422, %s423
      %p435 = scmp.eq.s32.totalorder %s44, 4
      %p436 = por %p434, %p435
      %p438 = scmp.ne.s32.totalorder %s423, %s437
      %p439 = scmp.eq.s32.totalorder %s44, 0
      %p440 = por %p438, %p439
      %s442 = sadd.s32 %s441, 1
      %p445 = scmp.eq.s32.totalorder %s38, 4
      %p446 = scmp.ne.s32.totalorder %s441, %s443
      %p447 = scmp.eq.s32.totalorder %s38, 0
      %p448 = por %p446, %p447
      %p449 = scmp.ne.s32.totalorder %s441, %s443
      %p450 = scmp.eq.s32.totalorder %s43, 4
      %p451 = por %p449, %p450
      %p452 = scmp.ne.s32.totalorder %s443, %s444
      %p453 = scmp.eq.s32.totalorder %s43, 0
      %p454 = por %p452, %p453
      %p455 = scmp.ne.s32.totalorder %s443, %s444
      %p456 = scmp.eq.s32.totalorder %s44, 4
      %p457 = por %p455, %p456
      %p459 = scmp.ne.s32.totalorder %s444, %s458
      %p460 = scmp.eq.s32.totalorder %s44, 0
      %p461 = por %p459, %p460
      %s463 = sadd.s32 %s462, 1
      %p466 = scmp.eq.s32.totalorder %s38, 4
      %p467 = scmp.ne.s32.totalorder %s462, %s464
      %p468 = scmp.eq.s32.totalorder %s38, 0
      %p469 = por %p467, %p468
      %p470 = scmp.ne.s32.totalorder %s462, %s464
      %p471 = scmp.eq.s32.totalorder %s43, 4
      %p472 = por %p470, %p471
      %p473 = scmp.ne.s32.totalorder %s464, %s465
      %p474 = scmp.eq.s32.totalorder %s43, 0
      %p475 = por %p473, %p474
      %p476 = scmp.ne.s32.totalorder %s464, %s465
      %p477 = scmp.eq.s32.totalorder %s44, 4
      %p478 = por %p476, %p477
      %p480 = scmp.ne.s32.totalorder %s465, %s479
      %p481 = scmp.eq.s32.totalorder %s44, 0
      %p482 = por %p480, %p481
      %s483 = ssub.s32 %s46, %s53
      %s484 = ssub.s32 %s45, %s57
      %s485 = sor.u32 %s483, %s484
      %p486 = scmp.eq.s32.totalorder %s485, 0
      %s488 = sadd.s32 %s487, 1
      %s489 = scalar_select %p486, %s487, %s488
      %p492 = pneg %p486
      %p493 = scmp.eq.s32.totalorder %s38, 4
      %p494 = por %p492, %p493
      %p495 = scmp.ne.s32.totalorder %s487, %s490
      %p496 = scmp.eq.s32.totalorder %s38, 0
      %p497 = por %p495, %p496
      %p498 = scmp.ne.s32.totalorder %s487, %s490
      %p499 = scmp.eq.s32.totalorder %s43, 4
      %p500 = por %p498, %p499
      %p501 = scmp.ne.s32.totalorder %s490, %s491
      %p502 = scmp.eq.s32.totalorder %s43, 0
      %p503 = por %p501, %p502
      %p504 = scmp.ne.s32.totalorder %s490, %s491
      %p505 = scmp.eq.s32.totalorder %s44, 4
      %p506 = por %p504, %p505
      %p508 = scmp.ne.s32.totalorder %s491, %s507
      %p509 = scmp.eq.s32.totalorder %s44, 0
      %p510 = por %p508, %p509
      %s511 = ssub.s32 %s45, %s57
      %p512 = scmp.eq.s32.totalorder %s511, 0
      %s514 = sadd.s32 %s513, 1
      %s515 = scalar_select %p512, %s513, %s514
      %p518 = pneg %p512
      %p519 = scmp.eq.s32.totalorder %s38, 4
      %p520 = por %p518, %p519
      %p521 = scmp.ne.s32.totalorder %s513, %s516
      %p522 = scmp.eq.s32.totalorder %s38, 0
      %p523 = por %p521, %p522
      %p524 = scmp.ne.s32.totalorder %s513, %s516
      %p525 = scmp.eq.s32.totalorder %s43, 4
      %p526 = por %p524, %p525
      %p527 = scmp.ne.s32.totalorder %s516, %s517
      %p528 = scmp.eq.s32.totalorder %s43, 0
      %p529 = por %p527, %p528
      %p530 = scmp.ne.s32.totalorder %s516, %s517
      %p531 = scmp.eq.s32.totalorder %s44, 4
      %p532 = por %p530, %p531
      %p534 = scmp.ne.s32.totalorder %s517, %s533
      %p535 = scmp.eq.s32.totalorder %s44, 0
      %p536 = por %p534, %p535
      %p537 = scmp.le.s32.totalorder 1, %s38
      %p538 = scmp.lt.s32.totalorder %s38, 6
      %p539 = pnand %p537, %p538
      %p540 = pneg %p539
      // Predicated region
      $region9: #{tpu_custom_call.1} parent=5 // pred_check
        _
      $region10: #{tpu_custom_call.1} parent=5 // pred_check_branch
        %542 = sbr.rel (%p539) target = $region12
      $region11: #{tpu_custom_call.1} parent=5 // pred_region
        %s543 = ssub.s32 %s38, 1
        // Predicated region
        $region13: #{tpu_custom_call.1} parent=11 // pred_check
          %p544 = pneg %p104
        $region14: #{tpu_custom_call.1} parent=11 // pred_check_branch
          %546 = sbr.rel (%p544) target = $region16
        $region15: #{tpu_custom_call.1} parent=11 // pred_region
          %s547 = smul.u32 2, %s47
          %p548 = scmp.lt.s32.totalorder %s547, 1
          %s549 = scalar_select %p548, %s547, 1
          %s550 = smul.addr %s549, 8
          %s551 = scalar_lea.vmem %s1, %s550
          %s552 = smul.u32 2, %s47
        $region16: #{tpu_custom_call.1} parent=11 // pred_fallthru
          _
        // Predicated region
        $region17: #{tpu_custom_call.1} parent=11 // pred_check
          %p553 = pneg %p130
        $region18: #{tpu_custom_call.1} parent=11 // pred_check_branch
          %555 = sbr.rel (%p553) target = $region20
        $region19: #{tpu_custom_call.1} parent=11 // pred_region
          %s556 = smul.u32 2, %s47
          %s558 = ssub.s32 256, 256
          %559 = vsyncadd [#allocation11], %s558
          %s560 = smul.addr %s556, 128
          %s561 = scalar_lea.hbm %s2, %s560
          %s562 = sshll.u32 [#allocation10], 4
          %s563 = int_to_ptr.vmem [resolvable:$true] %s562
          %568 = dma.hbm_to_vmem [thread:$0]  %s561, 256, %s563, [#allocation11], 128, 128, 8
        $region20: #{tpu_custom_call.1} parent=11 // pred_fallthru
          _
        // Predicated region
        $region21: #{tpu_custom_call.1} parent=11 // pred_check
          %p569 = pneg %p156
        $region22: #{tpu_custom_call.1} parent=11 // pred_check_branch
          %571 = sbr.rel (%p569) target = $region24
        $region23: #{tpu_custom_call.1} parent=11 // pred_region
          %s572 = smul.u32 2, %s47
          %s574 = ssub.s32 256, 256
          %575 = vsyncadd [#allocation11], %s574
          %s576 = smul.addr %s572, 128
          %s577 = scalar_lea.hbm %s3, %s576
          %s578 = sshll.u32 [#allocation12], 4
          %s579 = int_to_ptr.vmem [resolvable:$true] %s578
          %584 = dma.hbm_to_vmem [thread:$0]  %s577, 256, %s579, [#allocation11], 128, 128, 8
        $region24: #{tpu_custom_call.1} parent=11 // pred_fallthru
          _
        // Predicated region
        $region25: #{tpu_custom_call.1} parent=11 // pred_check
          %p585 = pneg %p182
        $region26: #{tpu_custom_call.1} parent=11 // pred_check_branch
          %587 = sbr.rel (%p585) target = $region28
        $region27: #{tpu_custom_call.1} parent=11 // pred_region
          %s588 = smul.u32 2, %s47
          %p589 = scmp.lt.s32.totalorder %s588, 1
          %s590 = scalar_select %p589, %s588, 1
          %s591 = smul.addr %s590, 8
          %s592 = scalar_lea.vmem %s4, %s591
          %s593 = smul.u32 2, %s47
        $region28: #{tpu_custom_call.1} parent=11 // pred_fallthru
          _
        // Predicated region
        $region29: #{tpu_custom_call.1} parent=11 // pred_check
          %p594 = pneg %p208
        $region30: #{tpu_custom_call.1} parent=11 // pred_check_branch
          %596 = sbr.rel (%p594) target = $region32
        $region31: #{tpu_custom_call.1} parent=11 // pred_region
          %s597 = smul.u32 2, %s47
          %s599 = ssub.s32 256, 256
          %600 = vsyncadd [#allocation14], %s599
          %s601 = smul.addr %s597, 128
          %s602 = scalar_lea.hbm %s5, %s601
          %s603 = sshll.u32 [#allocation13], 4
          %s604 = int_to_ptr.vmem [resolvable:$true] %s603
          %609 = dma.hbm_to_vmem [thread:$0]  %s602, 256, %s604, [#allocation14], 128, 128, 8
        $region32: #{tpu_custom_call.1} parent=11 // pred_fallthru
          _
        // Predicated region
        $region33: #{tpu_custom_call.1} parent=11 // pred_check
          %p610 = pneg %p234
        $region34: #{tpu_custom_call.1} parent=11 // pred_check_branch
          %612 = sbr.rel (%p610) target = $region36
        $region35: #{tpu_custom_call.1} parent=11 // pred_region
          %s613 = smul.u32 16, %s47
          %s615 = ssub.s32 1024, 1024
          %616 = vsyncadd [#allocation14], %s615
          %s617 = smul.addr %s613, 64
          %s618 = scalar_lea.hbm %s6, %s617
          %s619 = sshll.u32 [#allocation15], 4
          %s620 = int_to_ptr.vmem [resolvable:$true] %s619
          %625 = dma.hbm_to_vmem [thread:$0]  %s618, 1024, %s620, [#allocation14], 64, 64, 4
        $region36: #{tpu_custom_call.1} parent=11 // pred_fallthru
          _
        // Predicated region
        $region37: #{tpu_custom_call.1} parent=11 // pred_check
          %p626 = pneg %p260
        $region38: #{tpu_custom_call.1} parent=11 // pred_check_branch
          %628 = sbr.rel (%p626) target = $region40
        $region39: #{tpu_custom_call.1} parent=11 // pred_region
          %s629 = smul.u32 16, %s47
          %s631 = ssub.s32 1024, 1024
          %632 = vsyncadd [#allocation17], %s631
          %s633 = smul.addr %s629, 64
          %s634 = scalar_lea.hbm %s7, %s633
          %s635 = sshll.u32 [#allocation16], 4
          %s636 = int_to_ptr.vmem [resolvable:$true] %s635
          %641 = dma.hbm_to_vmem [thread:$0]  %s634, 1024, %s636, [#allocation17], 64, 64, 4
        $region40: #{tpu_custom_call.1} parent=11 // pred_fallthru
          _
        // Predicated region
        $region41: #{tpu_custom_call.1} parent=11 // pred_check
          %p642 = pneg %p286
        $region42: #{tpu_custom_call.1} parent=11 // pred_check_branch
          %644 = sbr.rel (%p642) target = $region44
        $region43: #{tpu_custom_call.1} parent=11 // pred_region
          %s645 = smul.u32 2, %s47
          %p646 = scmp.lt.s32.totalorder %s645, 1
          %s647 = scalar_select %p646, %s645, 1
          %s648 = smul.addr %s647, 8
          %s649 = scalar_lea.vmem %s8, %s648
          %s650 = smul.u32 2, %s47
        $region44: #{tpu_custom_call.1} parent=11 // pred_fallthru
          _
        // Predicated region
        $region45: #{tpu_custom_call.1} parent=11 // pred_check
          %p651 = pneg %p307
        $region46: #{tpu_custom_call.1} parent=11 // pred_check_branch
          %653 = sbr.rel (%p651) target = $region48
        $region47: #{tpu_custom_call.1} parent=11 // pred_region
          _
        $region48: #{tpu_custom_call.1} parent=11 // pred_fallthru
          _
        // Predicated region
        $region49: #{tpu_custom_call.1} parent=11 // pred_check
          %p654 = pneg %p328
        $region50: #{tpu_custom_call.1} parent=11 // pred_check_branch
          %656 = sbr.rel (%p654) target = $region52
        $region51: #{tpu_custom_call.1} parent=11 // pred_region
          %s658 = ssub.s32 128, 128
          %659 = vsyncadd [#allocation17], %s658
          %s660 = sshll.u32 [#allocation18], 4
          %s661 = int_to_ptr.vmem [resolvable:$true] %s660
          %666 = dma.hbm_to_vmem [thread:$0]  %s10, 128, %s661, [#allocation17], 64, 64, 4
        $region52: #{tpu_custom_call.1} parent=11 // pred_fallthru
          _
        // Predicated region
        $region53: #{tpu_custom_call.1} parent=11 // pred_check
          %p667 = pneg %p349
        $region54: #{tpu_custom_call.1} parent=11 // pred_check_branch
          %669 = sbr.rel (%p667) target = $region56
        $region55: #{tpu_custom_call.1} parent=11 // pred_region
          %s671 = ssub.s32 256, 256
          %672 = vsyncadd [#allocation20], %s671
          %s673 = sshll.u32 [#allocation19], 4
          %s674 = int_to_ptr.vmem [resolvable:$true] %s673
          %679 = dma.hbm_to_vmem [thread:$0]  %s11, 256, %s674, [#allocation20], 64, 64, 4
        $region56: #{tpu_custom_call.1} parent=11 // pred_fallthru
          _
        // Predicated region
        $region57: #{tpu_custom_call.1} parent=11 // pred_check
          %p680 = pneg %p370
        $region58: #{tpu_custom_call.1} parent=11 // pred_check_branch
          %682 = sbr.rel (%p680) target = $region60
        $region59: #{tpu_custom_call.1} parent=11 // pred_region
          _
        $region60: #{tpu_custom_call.1} parent=11 // pred_fallthru
          _
        // Predicated region
        $region61: #{tpu_custom_call.1} parent=11 // pred_check
          %p683 = pneg %p391
        $region62: #{tpu_custom_call.1} parent=11 // pred_check_branch
          %685 = sbr.rel (%p683) target = $region64
        $region63: #{tpu_custom_call.1} parent=11 // pred_region
          _
        $region64: #{tpu_custom_call.1} parent=11 // pred_fallthru
          _
        // Predicated region
        $region65: #{tpu_custom_call.1} parent=11 // pred_check
          %p686 = pneg %p412
        $region66: #{tpu_custom_call.1} parent=11 // pred_check_branch
          %688 = sbr.rel (%p686) target = $region68
        $region67: #{tpu_custom_call.1} parent=11 // pred_region
          %s690 = ssub.s32 256, 256
          %691 = vsyncadd [#allocation20], %s690
          %s692 = sshll.u32 [#allocation21], 4
          %s693 = int_to_ptr.vmem [resolvable:$true] %s692
          %698 = dma.hbm_to_vmem [thread:$0]  %s14, 256, %s693, [#allocation20], 64, 64, 4
        $region68: #{tpu_custom_call.1} parent=11 // pred_fallthru
          _
        // Predicated region
        $region69: #{tpu_custom_call.1} parent=11 // pred_check
          %p699 = pneg %p433
        $region70: #{tpu_custom_call.1} parent=11 // pred_check_branch
          %701 = sbr.rel (%p699) target = $region72
        $region71: #{tpu_custom_call.1} parent=11 // pred_region
          _
        $region72: #{tpu_custom_call.1} parent=11 // pred_fallthru
          _
        // Predicated region
        $region73: #{tpu_custom_call.1} parent=11 // pred_check
          %p702 = pneg %p454
        $region74: #{tpu_custom_call.1} parent=11 // pred_check_branch
          %704 = sbr.rel (%p702) target = $region76
        $region75: #{tpu_custom_call.1} parent=11 // pred_region
          %s706 = ssub.s32 256, 256
          %707 = vsyncadd [#allocation23], %s706
          %s708 = sshll.u32 [#allocation22], 4
          %s709 = int_to_ptr.vmem [resolvable:$true] %s708
          %714 = dma.hbm_to_vmem [thread:$0]  %s16, 256, %s709, [#allocation23], 64, 64, 4
        $region76: #{tpu_custom_call.1} parent=11 // pred_fallthru
          _
        // Predicated region
        $region77: #{tpu_custom_call.1} parent=11 // pred_check
          %p715 = pneg %p475
        $region78: #{tpu_custom_call.1} parent=11 // pred_check_branch
          %717 = sbr.rel (%p715) target = $region80
        $region79: #{tpu_custom_call.1} parent=11 // pred_region
          _
        $region80: #{tpu_custom_call.1} parent=11 // pred_fallthru
          _
      $region12: #{tpu_custom_call.1} parent=5 // pred_fallthru
        _
      %p718 = scmp.lt.s32.totalorder %s38, 5
      // Predicated region
      $region81: #{tpu_custom_call.1} parent=5 // pred_check
        %p719 = pneg %p718
      $region82: #{tpu_custom_call.1} parent=5 // pred_check_branch
        %721 = sbr.rel (%p719) target = $region84
      $region83: #{tpu_custom_call.1} parent=5 // pred_region
        // Predicated region
        $region85: #{tpu_custom_call.1} parent=83 // pred_check
          %p722 = pneg %p72
        $region86: #{tpu_custom_call.1} parent=83 // pred_check_branch
          %724 = sbr.rel (%p722) target = $region88
        $region87: #{tpu_custom_call.1} parent=83 // pred_region
          %s725 = sand.u32 %s62, 1
          %s726 = scalar_lea.sflag [#allocation8], %s725
          %s727 = sand.u32 %s62, 1
          %s728 = smul.addr %s727, 8
          %s729 = scalar_lea.vmem [#allocation7], %s728
          %s730 = smul.u32 2, %s45
          %s732 = ssub.s32 128, 128
          %733 = vsyncadd %s726, %s732
          %s734 = smul.addr %s46, 2
          %s735 = sadd.s32 %s730, %s734
          %s736 = smul.addr %s735, 64
          %s737 = scalar_lea.hbm %s0, %s736
          %s738 = sshll.u32 %s729, 4
          %s739 = int_to_ptr.vmem [resolvable:$true] %s738
          %744 = dma.hbm_to_vmem [thread:$0]  %s737, 128, %s739, %s726, 64, 64, 4
        $region88: #{tpu_custom_call.1} parent=83 // pred_fallthru
          _
      $region84: #{tpu_custom_call.1} parent=5 // pred_fallthru
        _
      %p745 = scmp.le.s32.totalorder 1, %s38
      %p746 = scmp.lt.s32.totalorder %s38, 6
      %p747 = pnand %p745, %p746
      %p748 = pneg %p747
      // Predicated region
      $region89: #{tpu_custom_call.1} parent=5 // pred_check
        _
      $region90: #{tpu_custom_call.1} parent=5 // pred_check_branch
        %750 = sbr.rel (%p747) target = $region92
      $region91: #{tpu_custom_call.1} parent=5 // pred_region
        %s751 = ssub.s32 %s38, 1
        %s752 = sand.u32 %s65, 1
        %s753 = scalar_lea.sflag [#allocation8], %s752
        %s754 = sand.u32 %s65, 1
        %s755 = smul.addr %s754, 8
        %s756 = scalar_lea.vmem [#allocation7], %s755
        // Predicated region
        $region93: #{tpu_custom_call.1} parent=91 // pred_check
          %p757 = pneg %p78
        $region94: #{tpu_custom_call.1} parent=91 // pred_check_branch
          %759 = sbr.rel (%p757) target = $region96
        $region95: #{tpu_custom_call.1} parent=91 // pred_region
          %760 = dma.done %s753, 128
        $region96: #{tpu_custom_call.1} parent=91 // pred_fallthru
          _
        // Predicated region
        $region97: #{tpu_custom_call.1} parent=91 // pred_check
          %p761 = pneg %p130
        $region98: #{tpu_custom_call.1} parent=91 // pred_check_branch
          %763 = sbr.rel (%p761) target = $region100
        $region99: #{tpu_custom_call.1} parent=91 // pred_region
          %764 = dma.done [#allocation11], 256
        $region100: #{tpu_custom_call.1} parent=91 // pred_fallthru
          _
        // Predicated region
        $region101: #{tpu_custom_call.1} parent=91 // pred_check
          %p765 = pneg %p156
        $region102: #{tpu_custom_call.1} parent=91 // pred_check_branch
          %767 = sbr.rel (%p765) target = $region104
        $region103: #{tpu_custom_call.1} parent=91 // pred_region
          %768 = dma.done [#allocation11], 256
        $region104: #{tpu_custom_call.1} parent=91 // pred_fallthru
          _
        // Predicated region
        $region105: #{tpu_custom_call.1} parent=91 // pred_check
          %p769 = pneg %p208
        $region106: #{tpu_custom_call.1} parent=91 // pred_check_branch
          %771 = sbr.rel (%p769) target = $region108
        $region107: #{tpu_custom_call.1} parent=91 // pred_region
          %772 = dma.done [#allocation14], 256
        $region108: #{tpu_custom_call.1} parent=91 // pred_fallthru
          _
        // Predicated region
        $region109: #{tpu_custom_call.1} parent=91 // pred_check
          %p773 = pneg %p234
        $region110: #{tpu_custom_call.1} parent=91 // pred_check_branch
          %775 = sbr.rel (%p773) target = $region112
        $region111: #{tpu_custom_call.1} parent=91 // pred_region
          %776 = dma.done [#allocation14], 1024
        $region112: #{tpu_custom_call.1} parent=91 // pred_fallthru
          _
        // Predicated region
        $region113: #{tpu_custom_call.1} parent=91 // pred_check
          %p777 = pneg %p260
        $region114: #{tpu_custom_call.1} parent=91 // pred_check_branch
          %779 = sbr.rel (%p777) target = $region116
        $region115: #{tpu_custom_call.1} parent=91 // pred_region
          %780 = dma.done [#allocation17], 1024
        $region116: #{tpu_custom_call.1} parent=91 // pred_fallthru
          _
        // Predicated region
        $region117: #{tpu_custom_call.1} parent=91 // pred_check
          %p781 = pneg %p328
        $region118: #{tpu_custom_call.1} parent=91 // pred_check_branch
          %783 = sbr.rel (%p781) target = $region120
        $region119: #{tpu_custom_call.1} parent=91 // pred_region
          %784 = dma.done [#allocation17], 128
        $region120: #{tpu_custom_call.1} parent=91 // pred_fallthru
          _
        // Predicated region
        $region121: #{tpu_custom_call.1} parent=91 // pred_check
          %p785 = pneg %p349
        $region122: #{tpu_custom_call.1} parent=91 // pred_check_branch
          %787 = sbr.rel (%p785) target = $region124
        $region123: #{tpu_custom_call.1} parent=91 // pred_region
          %788 = dma.done [#allocation20], 256
        $region124: #{tpu_custom_call.1} parent=91 // pred_fallthru
          _
        // Predicated region
        $region125: #{tpu_custom_call.1} parent=91 // pred_check
          %p789 = pneg %p412
        $region126: #{tpu_custom_call.1} parent=91 // pred_check_branch
          %791 = sbr.rel (%p789) target = $region128
        $region127: #{tpu_custom_call.1} parent=91 // pred_region
          %792 = dma.done [#allocation20], 256
        $region128: #{tpu_custom_call.1} parent=91 // pred_fallthru
          _
        // Predicated region
        $region129: #{tpu_custom_call.1} parent=91 // pred_check
          %p793 = pneg %p454
        $region130: #{tpu_custom_call.1} parent=91 // pred_check_branch
          %795 = sbr.rel (%p793) target = $region132
        $region131: #{tpu_custom_call.1} parent=91 // pred_region
          %796 = dma.done [#allocation23], 256
        $region132: #{tpu_custom_call.1} parent=91 // pred_fallthru
          _
        %s797 = sand.u32 %s65, 1
        %s798 = scalar_lea.sflag [#allocation8], %s797
        %s799 = sand.u32 %s65, 1
        %s800 = smul.addr %s799, 8
        %s801 = scalar_lea.vmem [#allocation7], %s800
        %p802 = pneg %p78
        %p803 = pneg %p75
        %s804 = smul.u32 2, %s47
        %p805 = scmp.lt.s32.totalorder %s804, 1
        %s806 = scalar_select %p805, %s804, 1
        %s807 = smul.addr %s806, 8
        %s808 = scalar_lea.vmem %s1, %s807
        %p809 = pneg %p104
        %p810 = pneg %p101
        %p811 = pneg %p130
        %p812 = pneg %p127
        %p813 = pneg %p156
        %p814 = pneg %p153
        %s815 = smul.u32 2, %s47
        %p816 = scmp.lt.s32.totalorder %s815, 1
        %s817 = scalar_select %p816, %s815, 1
        %s818 = smul.addr %s817, 8
        %s819 = scalar_lea.vmem %s4, %s818
        %p820 = pneg %p182
        %p821 = pneg %p179
        %p822 = pneg %p208
        %p823 = pneg %p205
        %p824 = pneg %p234
        %p825 = pneg %p231
        %p826 = pneg %p260
        %p827 = pneg %p257
        %s828 = smul.u32 2, %s47
        %p829 = scmp.lt.s32.totalorder %s828, 1
        %s830 = scalar_select %p829, %s828, 1
        %s831 = smul.addr %s830, 8
        %s832 = scalar_lea.vmem %s8, %s831
        %p833 = pneg %p286
        %p834 = pneg %p283
        %p835 = pneg %p307
        %p836 = pneg %p304
        %p837 = pneg %p328
        %p838 = pneg %p325
        %p839 = pneg %p349
        %p840 = pneg %p346
        %p841 = pneg %p370
        %p842 = pneg %p367
        %p843 = pneg %p391
        %p844 = pneg %p388
        %p845 = pneg %p412
        %p846 = pneg %p409
        %p847 = pneg %p433
        %p848 = pneg %p430
        %p849 = pneg %p454
        %p850 = pneg %p451
        %p851 = pneg %p475
        %p852 = pneg %p472
        %p853 = pneg %p503
        %p854 = pneg %p500
        %s855 = sand.u32 %s490, 1
        %s856 = scalar_lea.sflag [#allocation9], %s855
        %s857 = sand.u32 %s490, 1
        %s858 = smul.addr %s857, 16
        %s859 = scalar_lea.vmem [#allocation24], %s858
        %p860 = pneg %p529
        %p861 = pneg %p526
        %s862 = smul.u32 2, %s47
        %s863 = smul.u32 2, %s47
        %p864 = scmp.lt.s32.totalorder %s863, 1
        %s865 = scalar_select %p864, %s863, 1
        %s866 = smul.addr %s865, 8
        %s867 = scalar_lea.vmem %s1, %s866
        %s868 = smul.u32 2, %s47
        %s869 = smul.u32 2, %s47
        %s870 = smul.u32 2, %s47
        %s871 = smul.u32 2, %s47
        %p872 = scmp.lt.s32.totalorder %s871, 1
        %s873 = scalar_select %p872, %s871, 1
        %s874 = smul.addr %s873, 8
        %s875 = scalar_lea.vmem %s4, %s874
        %s876 = smul.u32 2, %s47
        %s877 = smul.u32 2, %s47
        %s878 = smul.u32 16, %s47
        %s879 = smul.u32 16, %s47
        %s880 = smul.u32 2, %s47
        %p881 = scmp.lt.s32.totalorder %s880, 1
        %s882 = scalar_select %p881, %s880, 1
        %s883 = smul.addr %s882, 8
        %s884 = scalar_lea.vmem %s8, %s883
        %s885 = smul.u32 2, %s47
        %s886 = smul.u32 2, %s47
        %s887 = smul.u32 2, %s47
        %p889 = scmp.eq.s32.totalorder %s48, 0
        // Predicated region
        $region133: #{tpu_custom_call.1} parent=91 // pred_check
          %p890 = pneg %p889
        $region134: #{tpu_custom_call.1} parent=91 // pred_check_branch
          %892 = sbr.rel (%p890) target = $region136
        $region135: #{tpu_custom_call.1} parent=91 // pred_region
          %v893 = vld [vmem:[%s867] sm:$0xff]
          %v894 = vld [vmem:[%s867 + $0x8] sm:$0xff]
          %vm895 = vcmask 261120
          %896 = vst.msk [vmem:[#allocation2] sm:$0xff] %vm895, %v893
          %897 = vst.msk [vmem:[#allocation2 + $0x8] sm:$0xff] %vm895, %v894
          %v898 = vld [vmem:[#allocation10] sm:$0xff]
          %v899 = vld [vmem:[#allocation10 + $0x8] sm:$0xff]
          %900 = vst.msk [vmem:[#allocation3] sm:$0xff] %vm895, %v898
          %901 = vst.msk [vmem:[#allocation3 + $0x8] sm:$0xff] %vm895, %v899
          %v902 = vld [vmem:[#allocation12] sm:$0xff]
          %v903 = vld [vmem:[#allocation12 + $0x8] sm:$0xff]
          %904 = vst.msk [vmem:[#allocation4] sm:$0xff] %vm895, %v902
          %905 = vst.msk [vmem:[#allocation4 + $0x8] sm:$0xff] %vm895, %v903
          %v906 = vld [vmem:[%s875] sm:$0xff]
          %v907 = vld [vmem:[%s875 + $0x8] sm:$0xff]
          %908 = vst.msk [vmem:[#allocation5] sm:$0xff] %vm895, %v906
          %909 = vst.msk [vmem:[#allocation5 + $0x8] sm:$0xff] %vm895, %v907
          %v910 = vld [vmem:[#allocation13] sm:$0xff]
          %v911 = vld [vmem:[#allocation13 + $0x8] sm:$0xff]
          %vm912 = vcmask 130048
          %913 = vst.msk [vmem:[#allocation6] sm:$0xff] %vm912, %v910
          %914 = vst.msk [vmem:[#allocation6 + $0x8] sm:$0xff] %vm912, %v911
        $region136: #{tpu_custom_call.1} parent=91 // pred_fallthru
          _
        %v915 = vld [vmem:[%s756] sm:$0xf]
        %v916 = vld [vmem:[%s756 + $0x4] sm:$0xf]
        %v917 = vld [vmem:[#allocation2] sm:$0xff]
        %v918 = vld [vmem:[#allocation2 + $0x8] sm:$0xff]
        %v919 = vld [vmem:[#allocation3] sm:$0xff]
        %v920 = vld [vmem:[#allocation3 + $0x8] sm:$0xff]
        %v921 = vld [vmem:[#allocation4] sm:$0xff]
        %v922 = vld [vmem:[#allocation4 + $0x8] sm:$0xff]
        %v923 = vld [vmem:[#allocation5] sm:$0xff]
        %v924 = vld [vmem:[#allocation5 + $0x8] sm:$0xff]
        %v925 = vld [vmem:[#allocation6] sm:$0xff]
        %v926 = vld [vmem:[#allocation6 + $0x8] sm:$0xff]
        %v927 = vld [vmem:[%s9] sm:$0xf]
        %v928 = vld [vmem:[%s9 + $0x4] sm:$0xf]
        %v929 = vld [vmem:[%s9 + $0x8] sm:$0xf]
        %v930 = vld [vmem:[%s9 + $0xc] sm:$0xf]
        %v931 = vpack.c.bf16 %v926, %v925
        %v932 = vld [vmem:[#allocation18] sm:$0xf]
        %v933 = vld [vmem:[#allocation18 + $0x4] sm:$0xf]
        %v936 = vunpack.c.l.b16 %v932
        %v937 = vunpack.c.l.b16 %v933
        %v938 = vpack.c.b16 %v937, %v936
        %vm940 = vcmask 130048
        %v942 = vsel %vm940, %v931, 0
        %944 = vmatprep.subr.bf16.mxu0 0
        %945 = vmatpush1.bf16.msra.mxu0 %v938
        %946 = vmatprep.subr.bf16.mxu0 0
        %947 = vmatpush1.bf16.msra.mxu0 0
        %948 = vmatprep.subr.bf16.mxu0 0
        %949 = vmatpush1.bf16.msra.mxu0 0
        %950 = vmatprep.subr.bf16.mxu0 0
        %951 = vmatpush1.bf16.msra.mxu0 0
        %952 = vmatprep.subr.bf16.mxu0 0
        %953 = vmatpush1.bf16.msra.mxu0 0
        %954 = vmatprep.subr.bf16.mxu0 0
        %955 = vmatpush1.bf16.msra.mxu0 0
        %956 = vmatprep.subr.bf16.mxu0 0
        %957 = vmatpush1.bf16.msra.mxu0 0
        %958 = vmatprep.subr.bf16.mxu0 0
        %959 = vmatpush1.bf16.msra.mxu0 0
        %960 = vmatprep.subr.bf16.mxu0 0
        %961 = vmatpush1.bf16.msra.mxu0 0
        %962 = vmatprep.subr.bf16.mxu0 0
        %963 = vmatpush1.bf16.msra.mxu0 0
        %964 = vmatprep.subr.bf16.mxu0 0
        %965 = vmatpush1.bf16.msra.mxu0 0
        %966 = vmatprep.subr.bf16.mxu0 0
        %967 = vmatpush1.bf16.msra.mxu0 0
        %968 = vmatprep.subr.bf16.mxu0 0
        %969 = vmatpush1.bf16.msra.mxu0 0
        %970 = vmatprep.subr.bf16.mxu0 0
        %971 = vmatpush1.bf16.msra.mxu0 0
        %972 = vmatprep.subr.bf16.mxu0 0
        %973 = vmatpush1.bf16.msra.mxu0 0
        %974 = vmatprep.subr.bf16.mxu0 0
        %975 = vmatpush1.bf16.msra.mxu0 0
        %976 = vmatprep.mubr.bf16.mxu0 0
        %977 = vmatmul.mubr.bf16.gmra.mrb[0].mxu0 %v942
        %v978 = vpop.f32.mrb[0].mxu0
        %v979 = vadd.f32 0.0, %v978
        %v980 = vpop.f32.mrb[0].mxu0
        %v981 = vpop.f32.mrb[0].mxu0
        %v982 = vadd.f32 0.0, %v981
        %v983 = vpop.f32.mrb[0].mxu0
        %984 = vdwg.mxu0
        %v987 = vunpack.c.l.b16 %v915
        %v988 = vunpack.c.l.b16 %v916
        %v989 = vpack.c.b16 %v988, %v987
        %v994 = vunpack.c.l.b16 %v927
        %v995 = vunpack.c.l.b16 %v928
        %v996 = vunpack.c.l.b16 %v929
        %v997 = vunpack.c.l.b16 %v930
        %v998 = vpack.c.b16 %v995, %v994
        %v999 = vpack.c.b16 %v997, %v996
        %vm1002 = vcmask 261120
        %v1004 = vsel %vm1002, %v989, 0
        %1006 = vmatprep.subr.bf16.mxu0 0
        %1007 = vmatpush1.bf16.msra.mxu0 %v998
        %1008 = vmatprep.subr.bf16.mxu0 0
        %1009 = vmatpush1.bf16.msra.mxu0 %v999
        %1010 = vmatprep.subr.bf16.mxu0 0
        %1011 = vmatpush1.bf16.msra.mxu0 0
        %1012 = vmatprep.subr.bf16.mxu0 0
        %1013 = vmatpush1.bf16.msra.mxu0 0
        %1014 = vmatprep.subr.bf16.mxu0 0
        %1015 = vmatpush1.bf16.msra.mxu0 0
        %1016 = vmatprep.subr.bf16.mxu0 0
        %1017 = vmatpush1.bf16.msra.mxu0 0
        %1018 = vmatprep.subr.bf16.mxu0 0
        %1019 = vmatpush1.bf16.msra.mxu0 0
        %1020 = vmatprep.subr.bf16.mxu0 0
        %1021 = vmatpush1.bf16.msra.mxu0 0
        %1022 = vmatprep.subr.bf16.mxu0 0
        %1023 = vmatpush1.bf16.msra.mxu0 0
        %1024 = vmatprep.subr.bf16.mxu0 0
        %1025 = vmatpush1.bf16.msra.mxu0 0
        %1026 = vmatprep.subr.bf16.mxu0 0
        %1027 = vmatpush1.bf16.msra.mxu0 0
        %1028 = vmatprep.subr.bf16.mxu0 0
        %1029 = vmatpush1.bf16.msra.mxu0 0
        %1030 = vmatprep.subr.bf16.mxu0 0
        %1031 = vmatpush1.bf16.msra.mxu0 0
        %1032 = vmatprep.subr.bf16.mxu0 0
        %1033 = vmatpush1.bf16.msra.mxu0 0
        %1034 = vmatprep.subr.bf16.mxu0 0
        %1035 = vmatpush1.bf16.msra.mxu0 0
        %1036 = vmatprep.subr.bf16.mxu0 0
        %1037 = vmatpush1.bf16.msra.mxu0 0
        %1038 = vmatprep.mubr.bf16.mxu0 0
        %1039 = vmatmul.mubr.bf16.gmra.mrb[0].mxu0 %v1004
        %v1040 = vpop.f32.mrb[0].mxu0
        %v1041 = vadd.f32 %v979, %v1040
        %v1042 = vpop.f32.mrb[0].mxu0
        %v1043 = vpop.f32.mrb[0].mxu0
        %v1044 = vadd.f32 %v982, %v1043
        %v1045 = vpop.f32.mrb[0].mxu0
        %1046 = vdwg.mxu0
        %v1047 = vpack.c.bf16 %v918, %v917
        %v1048 = vld [vmem:[#allocation19] sm:$0xf]
        %v1049 = vld [vmem:[#allocation19 + $0x4] sm:$0xf]
        %v1050 = vld [vmem:[#allocation19 + $0x8] sm:$0xf]
        %v1051 = vld [vmem:[#allocation19 + $0xc] sm:$0xf]
        %v1056 = vunpack.c.l.b16 %v1048
        %v1057 = vunpack.c.l.b16 %v1049
        %v1058 = vunpack.c.l.b16 %v1050
        %v1059 = vunpack.c.l.b16 %v1051
        %v1060 = vpack.c.b16 %v1057, %v1056
        %v1061 = vpack.c.b16 %v1059, %v1058
        %v1065 = vsel %vm1002, %v1047, 0
        %1067 = vmatprep.subr.bf16.mxu0 0
        %1068 = vmatpush1.bf16.msra.mxu0 %v1060
        %1069 = vmatprep.subr.bf16.mxu0 0
        %1070 = vmatpush1.bf16.msra.mxu0 %v1061
        %1071 = vmatprep.subr.bf16.mxu0 0
        %1072 = vmatpush1.bf16.msra.mxu0 0
        %1073 = vmatprep.subr.bf16.mxu0 0
        %1074 = vmatpush1.bf16.msra.mxu0 0
        %1075 = vmatprep.subr.bf16.mxu0 0
        %1076 = vmatpush1.bf16.msra.mxu0 0
        %1077 = vmatprep.subr.bf16.mxu0 0
        %1078 = vmatpush1.bf16.msra.mxu0 0
        %1079 = vmatprep.subr.bf16.mxu0 0
        %1080 = vmatpush1.bf16.msra.mxu0 0
        %1081 = vmatprep.subr.bf16.mxu0 0
        %1082 = vmatpush1.bf16.msra.mxu0 0
        %1083 = vmatprep.subr.bf16.mxu0 0
        %1084 = vmatpush1.bf16.msra.mxu0 0
        %1085 = vmatprep.subr.bf16.mxu0 0
        %1086 = vmatpush1.bf16.msra.mxu0 0
        %1087 = vmatprep.subr.bf16.mxu0 0
        %1088 = vmatpush1.bf16.msra.mxu0 0
        %1089 = vmatprep.subr.bf16.mxu0 0
        %1090 = vmatpush1.bf16.msra.mxu0 0
        %1091 = vmatprep.subr.bf16.mxu0 0
        %1092 = vmatpush1.bf16.msra.mxu0 0
        %1093 = vmatprep.subr.bf16.mxu0 0
        %1094 = vmatpush1.bf16.msra.mxu0 0
        %1095 = vmatprep.subr.bf16.mxu0 0
        %1096 = vmatpush1.bf16.msra.mxu0 0
        %1097 = vmatprep.subr.bf16.mxu0 0
        %1098 = vmatpush1.bf16.msra.mxu0 0
        %1099 = vmatprep.mubr.bf16.mxu0 0
        %1100 = vmatmul.mubr.bf16.gmra.mrb[0].mxu0 %v1065
        %v1101 = vpop.f32.mrb[0].mxu0
        %v1102 = vadd.f32 0.0, %v1101
        %v1103 = vpop.f32.mrb[0].mxu0
        %v1104 = vpop.f32.mrb[0].mxu0
        %v1105 = vadd.f32 0.0, %v1104
        %v1106 = vpop.f32.mrb[0].mxu0
        %1107 = vdwg.mxu0
        %v1108 = vadd.f32 %v1041, %v1102
        %v1109 = vadd.f32 %v1044, %v1105
        %v1110 = vld [vmem:[%s12] sm:$0x1]
        %v1112 = vlaneseq
        %v1113 = vshrl.u32 %v1112, 7
        %v1114 = vsub.s32 0, %v1113
        %v1115 = vrot.slane %v1110, %v1114
        %v1117 = vadd.f32 %v1108, %v1115
        %v1118 = vadd.f32 %v1109, %v1115
        %v1119 = vxor.u32 %v1117, 2147483648
        %v1120 = vxor.u32 %v1118, 2147483648
        %v1121 = vmul.f32 %v1119, 1.442695
        %v1122 = vpow.pop %v1121
        %v1123 = vmul.f32 %v1120, 1.442695
        %v1124 = vpow.pop %v1123
        %v1125 = vadd.f32 %v1122, 1.0
        %v1126 = vadd.f32 %v1124, 1.0
        %v1127 = vrcp.pop %v1125
        %v1128 = vmul.f32 1.0, %v1127
        %v1129 = vrcp.pop %v1126
        %v1130 = vmul.f32 1.0, %v1129
        %v1131 = vtanh.pop %v1117
        %v1132 = vtanh.pop %v1118
        %1135 = vrot.lane.b32.xlu0 %v919, 32
        %v1136 = vpop.permute.xlu0 %1135
        %1137 = vrot.lane.b32.xlu0 %v920, 32
        %v1138 = vpop.permute.xlu0 %1137
        %v1141 = vmul.f32 %v1128, %v1136
        %v1142 = vmul.f32 %v1130, %v1138
        %1145 = vrot.lane.b32.xlu0 %v1131, 64
        %v1146 = vpop.permute.xlu0 %1145
        %1147 = vrot.lane.b32.xlu0 %v1132, 64
        %v1148 = vpop.permute.xlu0 %1147
        %v1151 = vmul.f32 %v1128, %v1146
        %v1152 = vmul.f32 %v1130, %v1148
        %1155 = vrot.lane.b32.xlu0 %v1151, 32
        %v1156 = vpop.permute.xlu0 %1155
        %1157 = vrot.lane.b32.xlu0 %v1152, 32
        %v1158 = vpop.permute.xlu0 %1157
        %v1161 = vadd.f32 %v1141, %v1156
        %v1162 = vadd.f32 %v1142, %v1158
        %v1163 = vtanh.pop %v1161
        %v1164 = vtanh.pop %v1162
        %1167 = vrot.lane.b32.xlu0 %v1163, 64
        %v1168 = vpop.permute.xlu0 %1167
        %1169 = vrot.lane.b32.xlu0 %v1164, 64
        %v1170 = vpop.permute.xlu0 %1169
        %v1173 = vmul.f32 %v1128, %v1168
        %v1174 = vmul.f32 %v1130, %v1170
        %v1175 = vpack.c.bf16 %v1174, %v1173
        %v1176 = vld [vmem:[%s13] sm:$0xf]
        %v1177 = vld [vmem:[%s13 + $0x4] sm:$0xf]
        %v1178 = vld [vmem:[%s13 + $0x8] sm:$0xf]
        %v1179 = vld [vmem:[%s13 + $0xc] sm:$0xf]
        %v1180 = vpack.c.bf16 %v922, %v921
        %v1181 = vld [vmem:[#allocation21] sm:$0xf]
        %v1182 = vld [vmem:[#allocation21 + $0x4] sm:$0xf]
        %v1183 = vld [vmem:[#allocation21 + $0x8] sm:$0xf]
        %v1184 = vld [vmem:[#allocation21 + $0xc] sm:$0xf]
        %v1189 = vunpack.c.l.b16 %v1181
        %v1190 = vunpack.c.l.b16 %v1182
        %v1191 = vunpack.c.l.b16 %v1183
        %v1192 = vunpack.c.l.b16 %v1184
        %v1193 = vpack.c.b16 %v1190, %v1189
        %v1194 = vpack.c.b16 %v1192, %v1191
        %v1198 = vsel %vm1002, %v1180, 0
        %1200 = vmatprep.subr.bf16.mxu0 0
        %1201 = vmatpush1.bf16.msra.mxu0 %v1193
        %1202 = vmatprep.subr.bf16.mxu0 0
        %1203 = vmatpush1.bf16.msra.mxu0 %v1194
        %1204 = vmatprep.subr.bf16.mxu0 0
        %1205 = vmatpush1.bf16.msra.mxu0 0
        %1206 = vmatprep.subr.bf16.mxu0 0
        %1207 = vmatpush1.bf16.msra.mxu0 0
        %1208 = vmatprep.subr.bf16.mxu0 0
        %1209 = vmatpush1.bf16.msra.mxu0 0
        %1210 = vmatprep.subr.bf16.mxu0 0
        %1211 = vmatpush1.bf16.msra.mxu0 0
        %1212 = vmatprep.subr.bf16.mxu0 0
        %1213 = vmatpush1.bf16.msra.mxu0 0
        %1214 = vmatprep.subr.bf16.mxu0 0
        %1215 = vmatpush1.bf16.msra.mxu0 0
        %1216 = vmatprep.subr.bf16.mxu0 0
        %1217 = vmatpush1.bf16.msra.mxu0 0
        %1218 = vmatprep.subr.bf16.mxu0 0
        %1219 = vmatpush1.bf16.msra.mxu0 0
        %1220 = vmatprep.subr.bf16.mxu0 0
        %1221 = vmatpush1.bf16.msra.mxu0 0
        %1222 = vmatprep.subr.bf16.mxu0 0
        %1223 = vmatpush1.bf16.msra.mxu0 0
        %1224 = vmatprep.subr.bf16.mxu0 0
        %1225 = vmatpush1.bf16.msra.mxu0 0
        %1226 = vmatprep.subr.bf16.mxu0 0
        %1227 = vmatpush1.bf16.msra.mxu0 0
        %1228 = vmatprep.subr.bf16.mxu0 0
        %1229 = vmatpush1.bf16.msra.mxu0 0
        %1230 = vmatprep.subr.bf16.mxu0 0
        %1231 = vmatpush1.bf16.msra.mxu0 0
        %1232 = vmatprep.mubr.bf16.mxu0 0
        %1233 = vmatmul.mubr.bf16.gmra.mrb[0].mxu0 %v1198
        %v1234 = vpop.f32.mrb[0].mxu0
        %v1235 = vadd.f32 0.0, %v1234
        %v1236 = vpop.f32.mrb[0].mxu0
        %v1237 = vpop.f32.mrb[0].mxu0
        %v1238 = vadd.f32 0.0, %v1237
        %v1239 = vpop.f32.mrb[0].mxu0
        %1240 = vdwg.mxu0
        %1242 = vrot.lane.b32.xlu0 %v1175, 32
        %v1243 = vpop.permute.xlu0 %1242
        %v1248 = vunpack.c.l.b16 %v1176
        %v1249 = vunpack.c.l.b16 %v1177
        %v1250 = vunpack.c.l.b16 %v1178
        %v1251 = vunpack.c.l.b16 %v1179
        %v1252 = vpack.c.b16 %v1249, %v1248
        %v1253 = vpack.c.b16 %v1251, %v1250
        %v1257 = vsel %vm1002, %v1243, 0
        %1259 = vmatprep.subr.bf16.mxu0 0
        %1260 = vmatpush1.bf16.msra.mxu0 %v1252
        %1261 = vmatprep.subr.bf16.mxu0 0
        %1262 = vmatpush1.bf16.msra.mxu0 %v1253
        %1263 = vmatprep.subr.bf16.mxu0 0
        %1264 = vmatpush1.bf16.msra.mxu0 0
        %1265 = vmatprep.subr.bf16.mxu0 0
        %1266 = vmatpush1.bf16.msra.mxu0 0
        %1267 = vmatprep.subr.bf16.mxu0 0
        %1268 = vmatpush1.bf16.msra.mxu0 0
        %1269 = vmatprep.subr.bf16.mxu0 0
        %1270 = vmatpush1.bf16.msra.mxu0 0
        %1271 = vmatprep.subr.bf16.mxu0 0
        %1272 = vmatpush1.bf16.msra.mxu0 0
        %1273 = vmatprep.subr.bf16.mxu0 0
        %1274 = vmatpush1.bf16.msra.mxu0 0
        %1275 = vmatprep.subr.bf16.mxu0 0
        %1276 = vmatpush1.bf16.msra.mxu0 0
        %1277 = vmatprep.subr.bf16.mxu0 0
        %1278 = vmatpush1.bf16.msra.mxu0 0
        %1279 = vmatprep.subr.bf16.mxu0 0
        %1280 = vmatpush1.bf16.msra.mxu0 0
        %1281 = vmatprep.subr.bf16.mxu0 0
        %1282 = vmatpush1.bf16.msra.mxu0 0
        %1283 = vmatprep.subr.bf16.mxu0 0
        %1284 = vmatpush1.bf16.msra.mxu0 0
        %1285 = vmatprep.subr.bf16.mxu0 0
        %1286 = vmatpush1.bf16.msra.mxu0 0
        %1287 = vmatprep.subr.bf16.mxu0 0
        %1288 = vmatpush1.bf16.msra.mxu0 0
        %1289 = vmatprep.subr.bf16.mxu0 0
        %1290 = vmatpush1.bf16.msra.mxu0 0
        %1291 = vmatprep.mubr.bf16.mxu0 0
        %1292 = vmatmul.mubr.bf16.gmra.mrb[0].mxu0 %v1257
        %v1293 = vpop.f32.mrb[0].mxu0
        %v1294 = vadd.f32 %v1235, %v1293
        %v1295 = vpop.f32.mrb[0].mxu0
        %v1296 = vpop.f32.mrb[0].mxu0
        %v1297 = vadd.f32 %v1238, %v1296
        %v1298 = vpop.f32.mrb[0].mxu0
        %1299 = vdwg.mxu0
        %v1300 = vld [vmem:[%s15] sm:$0x1]
        %v1302 = vlaneseq
        %v1303 = vshrl.u32 %v1302, 7
        %v1304 = vsub.s32 0, %v1303
        %v1305 = vrot.slane %v1300, %v1304
        %v1307 = vadd.f32 %v1294, %v1305
        %v1308 = vadd.f32 %v1297, %v1305
        %v1309 = vxor.u32 %v1307, 2147483648
        %v1310 = vxor.u32 %v1308, 2147483648
        %v1311 = vmul.f32 %v1309, 1.442695
        %v1312 = vpow.pop %v1311
        %v1313 = vmul.f32 %v1310, 1.442695
        %v1314 = vpow.pop %v1313
        %v1315 = vadd.f32 %v1312, 1.0
        %v1316 = vadd.f32 %v1314, 1.0
        %v1317 = vrcp.pop %v1315
        %v1318 = vmul.f32 1.0, %v1317
        %v1319 = vrcp.pop %v1316
        %v1320 = vmul.f32 1.0, %v1319
        %v1321 = vtanh.pop %v1307
        %v1322 = vtanh.pop %v1308
        %1325 = vrot.lane.b32.xlu0 %v923, 32
        %v1326 = vpop.permute.xlu0 %1325
        %1327 = vrot.lane.b32.xlu0 %v924, 32
        %v1328 = vpop.permute.xlu0 %1327
        %v1331 = vmul.f32 %v1318, %v1326
        %v1332 = vmul.f32 %v1320, %v1328
        %1335 = vrot.lane.b32.xlu0 %v1321, 64
        %v1336 = vpop.permute.xlu0 %1335
        %1337 = vrot.lane.b32.xlu0 %v1322, 64
        %v1338 = vpop.permute.xlu0 %1337
        %v1341 = vmul.f32 %v1318, %v1336
        %v1342 = vmul.f32 %v1320, %v1338
        %1345 = vrot.lane.b32.xlu0 %v1341, 32
        %v1346 = vpop.permute.xlu0 %1345
        %1347 = vrot.lane.b32.xlu0 %v1342, 32
        %v1348 = vpop.permute.xlu0 %1347
        %v1351 = vadd.f32 %v1331, %v1346
        %v1352 = vadd.f32 %v1332, %v1348
        %v1353 = vtanh.pop %v1351
        %v1354 = vtanh.pop %v1352
        %1357 = vrot.lane.b32.xlu0 %v1353, 64
        %v1358 = vpop.permute.xlu0 %1357
        %1359 = vrot.lane.b32.xlu0 %v1354, 64
        %v1360 = vpop.permute.xlu0 %1359
        %v1363 = vmul.f32 %v1318, %v1358
        %v1364 = vmul.f32 %v1320, %v1360
        %v1365 = vpack.c.bf16 %v1364, %v1363
        %v1366 = vld [vmem:[#allocation22] sm:$0xf]
        %v1367 = vld [vmem:[#allocation22 + $0x4] sm:$0xf]
        %v1368 = vld [vmem:[#allocation22 + $0x8] sm:$0xf]
        %v1369 = vld [vmem:[#allocation22 + $0xc] sm:$0xf]
        %v1370 = vld [vmem:[%s17] sm:$0x1]
        %v1372 = vlaneseq
        %v1373 = vshrl.u32 %v1372, 7
        %v1374 = vsub.s32 0, %v1373
        %v1375 = vrot.slane %v1370, %v1374
        %1378 = vrot.lane.b32.xlu0 %v1365, 32
        %v1379 = vpop.permute.xlu0 %1378
        %v1384 = vunpack.c.l.b16 %v1366
        %v1385 = vunpack.c.l.b16 %v1367
        %v1386 = vunpack.c.l.b16 %v1368
        %v1387 = vunpack.c.l.b16 %v1369
        %v1388 = vpack.c.b16 %v1385, %v1384
        %v1389 = vpack.c.b16 %v1387, %v1386
        %v1393 = vsel %vm1002, %v1379, 0
        %1395 = vmatprep.subr.bf16.mxu0 0
        %1396 = vmatpush1.bf16.msra.mxu0 %v1388
        %1397 = vmatprep.subr.bf16.mxu0 0
        %1398 = vmatpush1.bf16.msra.mxu0 %v1389
        %1399 = vmatprep.subr.bf16.mxu0 0
        %1400 = vmatpush1.bf16.msra.mxu0 0
        %1401 = vmatprep.subr.bf16.mxu0 0
        %1402 = vmatpush1.bf16.msra.mxu0 0
        %1403 = vmatprep.subr.bf16.mxu0 0
        %1404 = vmatpush1.bf16.msra.mxu0 0
        %1405 = vmatprep.subr.bf16.mxu0 0
        %1406 = vmatpush1.bf16.msra.mxu0 0
        %1407 = vmatprep.subr.bf16.mxu0 0
        %1408 = vmatpush1.bf16.msra.mxu0 0
        %1409 = vmatprep.subr.bf16.mxu0 0
        %1410 = vmatpush1.bf16.msra.mxu0 0
        %1411 = vmatprep.subr.bf16.mxu0 0
        %1412 = vmatpush1.bf16.msra.mxu0 0
        %1413 = vmatprep.subr.bf16.mxu0 0
        %1414 = vmatpush1.bf16.msra.mxu0 0
        %1415 = vmatprep.subr.bf16.mxu0 0
        %1416 = vmatpush1.bf16.msra.mxu0 0
        %1417 = vmatprep.subr.bf16.mxu0 0
        %1418 = vmatpush1.bf16.msra.mxu0 0
        %1419 = vmatprep.subr.bf16.mxu0 0
        %1420 = vmatpush1.bf16.msra.mxu0 0
        %1421 = vmatprep.subr.bf16.mxu0 0
        %1422 = vmatpush1.bf16.msra.mxu0 0
        %1423 = vmatprep.subr.bf16.mxu0 0
        %1424 = vmatpush1.bf16.msra.mxu0 0
        %1425 = vmatprep.subr.bf16.mxu0 0
        %1426 = vmatpush1.bf16.msra.mxu0 0
        %1427 = vmatprep.mubr.bf16.mxu0 0
        %1428 = vmatmul.mubr.bf16.gmra.mrb[0].mxu0 %v1393
        %v1429 = vpop.f32.mrb[0].mxu0
        %v1430 = vadd.f32 %v1375, %v1429
        %v1431 = vpop.f32.mrb[0].mxu0
        %v1432 = vpop.f32.mrb[0].mxu0
        %v1433 = vadd.f32 %v1375, %v1432
        %v1434 = vpop.f32.mrb[0].mxu0
        %1435 = vdwg.mxu0
        %v1436 = vld [vmem:[#allocation15] sm:$0xf]
        %v1437 = vld [vmem:[#allocation15 + $0x4] sm:$0xf]
        %v1438 = vld [vmem:[#allocation15 + $0x8] sm:$0xf]
        %v1439 = vld [vmem:[#allocation15 + $0xc] sm:$0xf]
        %v1440 = vld [vmem:[#allocation15 + $0x10] sm:$0xf]
        %v1441 = vld [vmem:[#allocation15 + $0x14] sm:$0xf]
        %v1442 = vld [vmem:[#allocation15 + $0x18] sm:$0xf]
        %v1443 = vld [vmem:[#allocation15 + $0x1c] sm:$0xf]
        %v1444 = vld [vmem:[#allocation15 + $0x20] sm:$0xf]
        %v1445 = vld [vmem:[#allocation15 + $0x24] sm:$0xf]
        %v1446 = vld [vmem:[#allocation15 + $0x28] sm:$0xf]
        %v1447 = vld [vmem:[#allocation15 + $0x2c] sm:$0xf]
        %v1448 = vld [vmem:[#allocation15 + $0x30] sm:$0xf]
        %v1449 = vld [vmem:[#allocation15 + $0x34] sm:$0xf]
        %v1450 = vld [vmem:[#allocation15 + $0x38] sm:$0xf]
        %v1451 = vld [vmem:[#allocation15 + $0x3c] sm:$0xf]
        %v1452 = vunpack.c.l.bf16 %v1436
        %v1453 = vunpack.c.l.bf16 %v1437
        %v1454 = vunpack.c.l.bf16 %v1438
        %v1455 = vunpack.c.l.bf16 %v1439
        %v1456 = vunpack.c.l.bf16 %v1440
        %v1457 = vunpack.c.l.bf16 %v1441
        %v1458 = vunpack.c.l.bf16 %v1442
        %v1459 = vunpack.c.l.bf16 %v1443
        %v1460 = vunpack.c.l.bf16 %v1444
        %v1461 = vunpack.c.l.bf16 %v1445
        %v1462 = vunpack.c.l.bf16 %v1446
        %v1463 = vunpack.c.l.bf16 %v1447
        %v1464 = vunpack.c.l.bf16 %v1448
        %v1465 = vunpack.c.l.bf16 %v1449
        %v1466 = vunpack.c.l.bf16 %v1450
        %v1467 = vunpack.c.l.bf16 %v1451
        %v1468 = vld [vmem:[#allocation16] sm:$0xf]
        %v1469 = vld [vmem:[#allocation16 + $0x4] sm:$0xf]
        %v1470 = vld [vmem:[#allocation16 + $0x8] sm:$0xf]
        %v1471 = vld [vmem:[#allocation16 + $0xc] sm:$0xf]
        %v1472 = vld [vmem:[#allocation16 + $0x10] sm:$0xf]
        %v1473 = vld [vmem:[#allocation16 + $0x14] sm:$0xf]
        %v1474 = vld [vmem:[#allocation16 + $0x18] sm:$0xf]
        %v1475 = vld [vmem:[#allocation16 + $0x1c] sm:$0xf]
        %v1476 = vld [vmem:[#allocation16 + $0x20] sm:$0xf]
        %v1477 = vld [vmem:[#allocation16 + $0x24] sm:$0xf]
        %v1478 = vld [vmem:[#allocation16 + $0x28] sm:$0xf]
        %v1479 = vld [vmem:[#allocation16 + $0x2c] sm:$0xf]
        %v1480 = vld [vmem:[#allocation16 + $0x30] sm:$0xf]
        %v1481 = vld [vmem:[#allocation16 + $0x34] sm:$0xf]
        %v1482 = vld [vmem:[#allocation16 + $0x38] sm:$0xf]
        %v1483 = vld [vmem:[#allocation16 + $0x3c] sm:$0xf]
        %v1484 = vunpack.c.l.bf16 %v1468
        %v1485 = vunpack.c.l.bf16 %v1469
        %v1486 = vunpack.c.l.bf16 %v1470
        %v1487 = vunpack.c.l.bf16 %v1471
        %v1488 = vunpack.c.l.bf16 %v1472
        %v1489 = vunpack.c.l.bf16 %v1473
        %v1490 = vunpack.c.l.bf16 %v1474
        %v1491 = vunpack.c.l.bf16 %v1475
        %v1492 = vunpack.c.l.bf16 %v1476
        %v1493 = vunpack.c.l.bf16 %v1477
        %v1494 = vunpack.c.l.bf16 %v1478
        %v1495 = vunpack.c.l.bf16 %v1479
        %v1496 = vunpack.c.l.bf16 %v1480
        %v1497 = vunpack.c.l.bf16 %v1481
        %v1498 = vunpack.c.l.bf16 %v1482
        %v1499 = vunpack.c.l.bf16 %v1483
        %v1502 = vcombine.high %v1430, %v1430
        %v1504 = vunpack.c.l.s4 1966171168
        %v1505 = vunpack.c.0.s8 %v1504
        %v1506 = vlaneseq
        %v1507 = vshrl.u32 %v1506, 7
        %v1508 = vsub.s32 %v1505, %v1507
        %v1509 = vrot.slane %v1430, %v1508
        %v1511 = vunpack.c.l.s4 1966171168
        %v1512 = vunpack.c.0.s8 %v1511
        %v1513 = vlaneseq
        %v1514 = vshrl.u32 %v1513, 7
        %v1515 = vsub.s32 %v1512, %v1514
        %v1516 = vrot.slane %v1502, %v1515
        %v1517 = vcombine.high %v1509, %v1509
        %v1518 = vcombine.high %v1516, %v1516
        %v1520 = vunpack.c.l.s4 1966171168
        %v1521 = vunpack.c.0.s8 %v1520
        %v1522 = vlaneseq
        %v1523 = vshrl.u32 %v1522, 7
        %v1524 = vsub.s32 %v1521, %v1523
        %v1525 = vrot.slane %v1509, %v1524
        %v1527 = vunpack.c.l.s4 1966171168
        %v1528 = vunpack.c.0.s8 %v1527
        %v1529 = vlaneseq
        %v1530 = vshrl.u32 %v1529, 7
        %v1531 = vsub.s32 %v1528, %v1530
        %v1532 = vrot.slane %v1516, %v1531
        %v1534 = vunpack.c.l.s4 1966171168
        %v1535 = vunpack.c.0.s8 %v1534
        %v1536 = vlaneseq
        %v1537 = vshrl.u32 %v1536, 7
        %v1538 = vsub.s32 %v1535, %v1537
        %v1539 = vrot.slane %v1517, %v1538
        %v1541 = vunpack.c.l.s4 1966171168
        %v1542 = vunpack.c.0.s8 %v1541
        %v1543 = vlaneseq
        %v1544 = vshrl.u32 %v1543, 7
        %v1545 = vsub.s32 %v1542, %v1544
        %v1546 = vrot.slane %v1518, %v1545
        %v1547 = vcombine.high %v1525, %v1525
        %v1548 = vcombine.high %v1532, %v1532
        %v1549 = vcombine.high %v1539, %v1539
        %v1550 = vcombine.high %v1546, %v1546
        %v1551 = vcombine.high %v1433, %v1433
        %v1553 = vunpack.c.l.s4 1966171168
        %v1554 = vunpack.c.0.s8 %v1553
        %v1555 = vlaneseq
        %v1556 = vshrl.u32 %v1555, 7
        %v1557 = vsub.s32 %v1554, %v1556
        %v1558 = vrot.slane %v1433, %v1557
        %v1560 = vunpack.c.l.s4 1966171168
        %v1561 = vunpack.c.0.s8 %v1560
        %v1562 = vlaneseq
        %v1563 = vshrl.u32 %v1562, 7
        %v1564 = vsub.s32 %v1561, %v1563
        %v1565 = vrot.slane %v1551, %v1564
        %v1566 = vcombine.high %v1558, %v1558
        %v1567 = vcombine.high %v1565, %v1565
        %v1569 = vunpack.c.l.s4 1966171168
        %v1570 = vunpack.c.0.s8 %v1569
        %v1571 = vlaneseq
        %v1572 = vshrl.u32 %v1571, 7
        %v1573 = vsub.s32 %v1570, %v1572
        %v1574 = vrot.slane %v1558, %v1573
        %v1576 = vunpack.c.l.s4 1966171168
        %v1577 = vunpack.c.0.s8 %v1576
        %v1578 = vlaneseq
        %v1579 = vshrl.u32 %v1578, 7
        %v1580 = vsub.s32 %v1577, %v1579
        %v1581 = vrot.slane %v1565, %v1580
        %v1583 = vunpack.c.l.s4 1966171168
        %v1584 = vunpack.c.0.s8 %v1583
        %v1585 = vlaneseq
        %v1586 = vshrl.u32 %v1585, 7
        %v1587 = vsub.s32 %v1584, %v1586
        %v1588 = vrot.slane %v1566, %v1587
        %v1590 = vunpack.c.l.s4 1966171168
        %v1591 = vunpack.c.0.s8 %v1590
        %v1592 = vlaneseq
        %v1593 = vshrl.u32 %v1592, 7
        %v1594 = vsub.s32 %v1591, %v1593
        %v1595 = vrot.slane %v1567, %v1594
        %v1596 = vcombine.high %v1574, %v1574
        %v1597 = vcombine.high %v1581, %v1581
        %v1598 = vcombine.high %v1588, %v1588
        %v1599 = vcombine.high %v1595, %v1595
        %v1600 = vlaneseq
        %v1601 = vshrl.u32 %v1600, 7
        %v1602 = vsub.s32 0, %v1601
        %v1603 = vrot.slane %v1525, %v1602
        %v1604 = vlaneseq
        %v1605 = vshrl.u32 %v1604, 7
        %v1606 = vsub.s32 0, %v1605
        %v1607 = vrot.slane %v1539, %v1606
        %v1608 = vlaneseq
        %v1609 = vshrl.u32 %v1608, 7
        %v1610 = vsub.s32 0, %v1609
        %v1611 = vrot.slane %v1547, %v1610
        %v1612 = vlaneseq
        %v1613 = vshrl.u32 %v1612, 7
        %v1614 = vsub.s32 0, %v1613
        %v1615 = vrot.slane %v1549, %v1614
        %v1616 = vlaneseq
        %v1617 = vshrl.u32 %v1616, 7
        %v1618 = vsub.s32 0, %v1617
        %v1619 = vrot.slane %v1532, %v1618
        %v1620 = vlaneseq
        %v1621 = vshrl.u32 %v1620, 7
        %v1622 = vsub.s32 0, %v1621
        %v1623 = vrot.slane %v1546, %v1622
        %v1624 = vlaneseq
        %v1625 = vshrl.u32 %v1624, 7
        %v1626 = vsub.s32 0, %v1625
        %v1627 = vrot.slane %v1548, %v1626
        %v1628 = vlaneseq
        %v1629 = vshrl.u32 %v1628, 7
        %v1630 = vsub.s32 0, %v1629
        %v1631 = vrot.slane %v1550, %v1630
        %v1632 = vlaneseq
        %v1633 = vshrl.u32 %v1632, 7
        %v1634 = vsub.s32 0, %v1633
        %v1635 = vrot.slane %v1574, %v1634
        %v1636 = vlaneseq
        %v1637 = vshrl.u32 %v1636, 7
        %v1638 = vsub.s32 0, %v1637
        %v1639 = vrot.slane %v1588, %v1638
        %v1640 = vlaneseq
        %v1641 = vshrl.u32 %v1640, 7
        %v1642 = vsub.s32 0, %v1641
        %v1643 = vrot.slane %v1596, %v1642
        %v1644 = vlaneseq
        %v1645 = vshrl.u32 %v1644, 7
        %v1646 = vsub.s32 0, %v1645
        %v1647 = vrot.slane %v1598, %v1646
        %v1648 = vlaneseq
        %v1649 = vshrl.u32 %v1648, 7
        %v1650 = vsub.s32 0, %v1649
        %v1651 = vrot.slane %v1581, %v1650
        %v1652 = vlaneseq
        %v1653 = vshrl.u32 %v1652, 7
        %v1654 = vsub.s32 0, %v1653
        %v1655 = vrot.slane %v1595, %v1654
        %v1656 = vlaneseq
        %v1657 = vshrl.u32 %v1656, 7
        %v1658 = vsub.s32 0, %v1657
        %v1659 = vrot.slane %v1597, %v1658
        %v1660 = vlaneseq
        %v1661 = vshrl.u32 %v1660, 7
        %v1662 = vsub.s32 0, %v1661
        %v1663 = vrot.slane %v1599, %v1662
        %v1680 = vmul.f32 %v1603, %v1452
        %v1681 = vmul.f32 %v1607, %v1453
        %v1682 = vmul.f32 %v1611, %v1454
        %v1683 = vmul.f32 %v1615, %v1455
        %v1684 = vmul.f32 %v1619, %v1456
        %v1685 = vmul.f32 %v1623, %v1457
        %v1686 = vmul.f32 %v1627, %v1458
        %v1687 = vmul.f32 %v1631, %v1459
        %v1688 = vmul.f32 %v1635, %v1460
        %v1689 = vmul.f32 %v1639, %v1461
        %v1690 = vmul.f32 %v1643, %v1462
        %v1691 = vmul.f32 %v1647, %v1463
        %v1692 = vmul.f32 %v1651, %v1464
        %v1693 = vmul.f32 %v1655, %v1465
        %v1694 = vmul.f32 %v1659, %v1466
        %v1695 = vmul.f32 %v1663, %v1467
        %v1696 = vsel %vm940, %v1680, 0.0
        %1697 = vadd.xlane.f32.xlu0 %v1696
        %v1698 = vpop.xlane.xlu0 %1697
        %v1699 = vsel %vm940, %v1681, 0.0
        %1700 = vadd.xlane.f32.xlu0 %v1699
        %v1701 = vpop.xlane.xlu0 %1700
        %v1702 = vsel %vm940, %v1682, 0.0
        %1703 = vadd.xlane.f32.xlu0 %v1702
        %v1704 = vpop.xlane.xlu0 %1703
        %v1705 = vsel %vm940, %v1683, 0.0
        %1706 = vadd.xlane.f32.xlu0 %v1705
        %v1707 = vpop.xlane.xlu0 %1706
        %v1708 = vsel %vm940, %v1684, 0.0
        %1709 = vadd.xlane.f32.xlu0 %v1708
        %v1710 = vpop.xlane.xlu0 %1709
        %v1711 = vsel %vm940, %v1685, 0.0
        %1712 = vadd.xlane.f32.xlu0 %v1711
        %v1713 = vpop.xlane.xlu0 %1712
        %v1714 = vsel %vm940, %v1686, 0.0
        %1715 = vadd.xlane.f32.xlu0 %v1714
        %v1716 = vpop.xlane.xlu0 %1715
        %v1717 = vsel %vm940, %v1687, 0.0
        %1718 = vadd.xlane.f32.xlu0 %v1717
        %v1719 = vpop.xlane.xlu0 %1718
        %v1720 = vsel %vm940, %v1688, 0.0
        %1721 = vadd.xlane.f32.xlu0 %v1720
        %v1722 = vpop.xlane.xlu0 %1721
        %v1723 = vsel %vm940, %v1689, 0.0
        %1724 = vadd.xlane.f32.xlu0 %v1723
        %v1725 = vpop.xlane.xlu0 %1724
        %v1726 = vsel %vm940, %v1690, 0.0
        %1727 = vadd.xlane.f32.xlu0 %v1726
        %v1728 = vpop.xlane.xlu0 %1727
        %v1729 = vsel %vm940, %v1691, 0.0
        %1730 = vadd.xlane.f32.xlu0 %v1729
        %v1731 = vpop.xlane.xlu0 %1730
        %v1732 = vsel %vm940, %v1692, 0.0
        %1733 = vadd.xlane.f32.xlu0 %v1732
        %v1734 = vpop.xlane.xlu0 %1733
        %v1735 = vsel %vm940, %v1693, 0.0
        %1736 = vadd.xlane.f32.xlu0 %v1735
        %v1737 = vpop.xlane.xlu0 %1736
        %v1738 = vsel %vm940, %v1694, 0.0
        %1739 = vadd.xlane.f32.xlu0 %v1738
        %v1740 = vpop.xlane.xlu0 %1739
        %v1741 = vsel %vm940, %v1695, 0.0
        %1742 = vadd.xlane.f32.xlu0 %v1741
        %v1743 = vpop.xlane.xlu0 %1742
        %v1744 = vlaneseq
        %v1745 = vand.u32 %v1744, 127
        %v1746 = vld [vmem:[%s884] sm:$0xff]
        %v1747 = vld [vmem:[%s884 + $0x8] sm:$0xff]
        %1748 = vset.pattern.permute.xlu0 0
        %1749 = vperm.xlu0 %1748, %v1746
        %v1750 = vpop.permute.xlu0 %1749
        %1751 = vset.pattern.permute.xlu0 0
        %1752 = vperm.xlu0 %1751, %v1747
        %v1753 = vpop.permute.xlu0 %1752
        %vm1754 = vcmp.lt.s32.totalorder %v1745, %v1750
        %vm1755 = vcmp.lt.s32.totalorder %v1745, %v1753
        %v1772 = vlaneseq
        %v1773 = vshrl.u32 %v1772, 7
        %v1774 = vsub.s32 %v1745, %v1773
        %v1775 = vrot.slane %v1698, %v1774
        %v1776 = vlaneseq
        %v1777 = vshrl.u32 %v1776, 7
        %v1778 = vsub.s32 %v1745, %v1777
        %v1779 = vrot.slane %v1701, %v1778
        %v1780 = vlaneseq
        %v1781 = vshrl.u32 %v1780, 7
        %v1782 = vsub.s32 %v1745, %v1781
        %v1783 = vrot.slane %v1704, %v1782
        %v1784 = vlaneseq
        %v1785 = vshrl.u32 %v1784, 7
        %v1786 = vsub.s32 %v1745, %v1785
        %v1787 = vrot.slane %v1707, %v1786
        %v1788 = vlaneseq
        %v1789 = vshrl.u32 %v1788, 7
        %v1790 = vsub.s32 %v1745, %v1789
        %v1791 = vrot.slane %v1710, %v1790
        %v1792 = vlaneseq
        %v1793 = vshrl.u32 %v1792, 7
        %v1794 = vsub.s32 %v1745, %v1793
        %v1795 = vrot.slane %v1713, %v1794
        %v1796 = vlaneseq
        %v1797 = vshrl.u32 %v1796, 7
        %v1798 = vsub.s32 %v1745, %v1797
        %v1799 = vrot.slane %v1716, %v1798
        %v1800 = vlaneseq
        %v1801 = vshrl.u32 %v1800, 7
        %v1802 = vsub.s32 %v1745, %v1801
        %v1803 = vrot.slane %v1719, %v1802
        %v1804 = vlaneseq
        %v1805 = vshrl.u32 %v1804, 7
        %v1806 = vsub.s32 %v1745, %v1805
        %v1807 = vrot.slane %v1722, %v1806
        %v1808 = vlaneseq
        %v1809 = vshrl.u32 %v1808, 7
        %v1810 = vsub.s32 %v1745, %v1809
        %v1811 = vrot.slane %v1725, %v1810
        %v1812 = vlaneseq
        %v1813 = vshrl.u32 %v1812, 7
        %v1814 = vsub.s32 %v1745, %v1813
        %v1815 = vrot.slane %v1728, %v1814
        %v1816 = vlaneseq
        %v1817 = vshrl.u32 %v1816, 7
        %v1818 = vsub.s32 %v1745, %v1817
        %v1819 = vrot.slane %v1731, %v1818
        %v1820 = vlaneseq
        %v1821 = vshrl.u32 %v1820, 7
        %v1822 = vsub.s32 %v1745, %v1821
        %v1823 = vrot.slane %v1734, %v1822
        %v1824 = vlaneseq
        %v1825 = vshrl.u32 %v1824, 7
        %v1826 = vsub.s32 %v1745, %v1825
        %v1827 = vrot.slane %v1737, %v1826
        %v1828 = vlaneseq
        %v1829 = vshrl.u32 %v1828, 7
        %v1830 = vsub.s32 %v1745, %v1829
        %v1831 = vrot.slane %v1740, %v1830
        %v1832 = vlaneseq
        %v1833 = vshrl.u32 %v1832, 7
        %v1834 = vsub.s32 %v1745, %v1833
        %v1835 = vrot.slane %v1743, %v1834
        %vm1836 = vcmask 1041409
        %v1837 = vsel %vm1836, %v1779, %v1775
        %vm1838 = vcmask 1042434
        %v1839 = vsel %vm1838, %v1783, %v1837
        %vm1840 = vcmask 1043459
        %v1841 = vsel %vm1840, %v1787, %v1839
        %vm1842 = vcmask 1044484
        %v1843 = vsel %vm1842, %v1791, %v1841
        %vm1844 = vcmask 1045509
        %v1845 = vsel %vm1844, %v1795, %v1843
        %vm1846 = vcmask 1046534
        %v1847 = vsel %vm1846, %v1799, %v1845
        %vm1848 = vcmask 1047559
        %v1849 = vsel %vm1848, %v1803, %v1847
        %v1850 = vsel %vm1836, %v1811, %v1807
        %v1851 = vsel %vm1838, %v1815, %v1850
        %v1852 = vsel %vm1840, %v1819, %v1851
        %v1853 = vsel %vm1842, %v1823, %v1852
        %v1854 = vsel %vm1844, %v1827, %v1853
        %v1855 = vsel %vm1846, %v1831, %v1854
        %v1856 = vsel %vm1848, %v1835, %v1855
        %v1859 = vsel %vm1754, %v1849, -1e+30
        %v1860 = vsel %vm1755, %v1856, -1e+30
        %vm1861 = vcmask 64512
        %v1862 = vsel %vm1861, %v1859, -inf
        %1863 = vmax.xlane.f32.xlu0 %v1862
        %v1864 = vpop.xlane.xlu0 %1863
        %v1865 = vsel %vm1861, %v1860, -inf
        %1866 = vmax.xlane.f32.xlu0 %v1865
        %v1867 = vpop.xlane.xlu0 %1866
        %v1868 = vsub.f32 %v1859, %v1864
        %v1869 = vsub.f32 %v1860, %v1867
        %v1870 = vmul.f32 %v1868, 1.442695
        %v1871 = vpow.pop %v1870
        %v1872 = vmul.f32 %v1869, 1.442695
        %v1873 = vpow.pop %v1872
        %v1874 = vsel %vm1861, %v1871, 0.0
        %1875 = vadd.xlane.f32.xlu0 %v1874
        %v1876 = vpop.xlane.xlu0 %1875
        %v1877 = vsel %vm1861, %v1873, 0.0
        %1878 = vadd.xlane.f32.xlu0 %v1877
        %v1879 = vpop.xlane.xlu0 %1878
        %v1880 = vrcp.pop %v1876
        %v1881 = vrcp.pop %v1879
        %v1882 = vmul.f32 %v1871, %v1880
        %v1883 = vmul.f32 %v1873, %v1881
        %v1884 = vlaneseq
        %v1885 = vshrl.u32 %v1884, 7
        %v1886 = vsub.s32 0, %v1885
        %v1887 = vrot.slane %v1882, %v1886
        %1889 = vbcast.lane.b32.xlu0 %v1887, 256
        %v1890 = vpop.permute.xlu0 %1889
        %v1891 = vlaneseq
        %v1892 = vshrl.u32 %v1891, 7
        %v1893 = vsub.s32 1, %v1892
        %v1894 = vrot.slane %v1882, %v1893
        %1896 = vbcast.lane.b32.xlu0 %v1894, 256
        %v1897 = vpop.permute.xlu0 %1896
        %v1898 = vlaneseq
        %v1899 = vshrl.u32 %v1898, 7
        %v1900 = vsub.s32 2, %v1899
        %v1901 = vrot.slane %v1882, %v1900
        %1903 = vbcast.lane.b32.xlu0 %v1901, 256
        %v1904 = vpop.permute.xlu0 %1903
        %v1905 = vlaneseq
        %v1906 = vshrl.u32 %v1905, 7
        %v1907 = vsub.s32 3, %v1906
        %v1908 = vrot.slane %v1882, %v1907
        %1910 = vbcast.lane.b32.xlu0 %v1908, 256
        %v1911 = vpop.permute.xlu0 %1910
        %v1912 = vlaneseq
        %v1913 = vshrl.u32 %v1912, 7
        %v1914 = vsub.s32 4, %v1913
        %v1915 = vrot.slane %v1882, %v1914
        %1917 = vbcast.lane.b32.xlu0 %v1915, 256
        %v1918 = vpop.permute.xlu0 %1917
        %v1919 = vlaneseq
        %v1920 = vshrl.u32 %v1919, 7
        %v1921 = vsub.s32 5, %v1920
        %v1922 = vrot.slane %v1882, %v1921
        %1924 = vbcast.lane.b32.xlu0 %v1922, 256
        %v1925 = vpop.permute.xlu0 %1924
        %v1926 = vlaneseq
        %v1927 = vshrl.u32 %v1926, 7
        %v1928 = vsub.s32 6, %v1927
        %v1929 = vrot.slane %v1882, %v1928
        %1931 = vbcast.lane.b32.xlu0 %v1929, 256
        %v1932 = vpop.permute.xlu0 %1931
        %v1933 = vlaneseq
        %v1934 = vshrl.u32 %v1933, 7
        %v1935 = vsub.s32 7, %v1934
        %v1936 = vrot.slane %v1882, %v1935
        %1938 = vbcast.lane.b32.xlu0 %v1936, 256
        %v1939 = vpop.permute.xlu0 %1938
        %v1940 = vlaneseq
        %v1941 = vshrl.u32 %v1940, 7
        %v1942 = vsub.s32 0, %v1941
        %v1943 = vrot.slane %v1883, %v1942
        %1945 = vbcast.lane.b32.xlu0 %v1943, 256
        %v1946 = vpop.permute.xlu0 %1945
        %v1947 = vlaneseq
        %v1948 = vshrl.u32 %v1947, 7
        %v1949 = vsub.s32 1, %v1948
        %v1950 = vrot.slane %v1883, %v1949
        %1952 = vbcast.lane.b32.xlu0 %v1950, 256
        %v1953 = vpop.permute.xlu0 %1952
        %v1954 = vlaneseq
        %v1955 = vshrl.u32 %v1954, 7
        %v1956 = vsub.s32 2, %v1955
        %v1957 = vrot.slane %v1883, %v1956
        %1959 = vbcast.lane.b32.xlu0 %v1957, 256
        %v1960 = vpop.permute.xlu0 %1959
        %v1961 = vlaneseq
        %v1962 = vshrl.u32 %v1961, 7
        %v1963 = vsub.s32 3, %v1962
        %v1964 = vrot.slane %v1883, %v1963
        %1966 = vbcast.lane.b32.xlu0 %v1964, 256
        %v1967 = vpop.permute.xlu0 %1966
        %v1968 = vlaneseq
        %v1969 = vshrl.u32 %v1968, 7
        %v1970 = vsub.s32 4, %v1969
        %v1971 = vrot.slane %v1883, %v1970
        %1973 = vbcast.lane.b32.xlu0 %v1971, 256
        %v1974 = vpop.permute.xlu0 %1973
        %v1975 = vlaneseq
        %v1976 = vshrl.u32 %v1975, 7
        %v1977 = vsub.s32 5, %v1976
        %v1978 = vrot.slane %v1883, %v1977
        %1980 = vbcast.lane.b32.xlu0 %v1978, 256
        %v1981 = vpop.permute.xlu0 %1980
        %v1982 = vlaneseq
        %v1983 = vshrl.u32 %v1982, 7
        %v1984 = vsub.s32 6, %v1983
        %v1985 = vrot.slane %v1883, %v1984
        %1987 = vbcast.lane.b32.xlu0 %v1985, 256
        %v1988 = vpop.permute.xlu0 %1987
        %v1989 = vlaneseq
        %v1990 = vshrl.u32 %v1989, 7
        %v1991 = vsub.s32 7, %v1990
        %v1992 = vrot.slane %v1883, %v1991
        %1994 = vbcast.lane.b32.xlu0 %v1992, 256
        %v1995 = vpop.permute.xlu0 %1994
        %v1996 = vmul.f32 %v1890, %v1484
        %v1997 = vmul.f32 %v1897, %v1485
        %v1998 = vmul.f32 %v1904, %v1486
        %v1999 = vmul.f32 %v1911, %v1487
        %v2000 = vmul.f32 %v1918, %v1488
        %v2001 = vmul.f32 %v1925, %v1489
        %v2002 = vmul.f32 %v1932, %v1490
        %v2003 = vmul.f32 %v1939, %v1491
        %v2004 = vmul.f32 %v1946, %v1492
        %v2005 = vmul.f32 %v1953, %v1493
        %v2006 = vmul.f32 %v1960, %v1494
        %v2007 = vmul.f32 %v1967, %v1495
        %v2008 = vmul.f32 %v1974, %v1496
        %v2009 = vmul.f32 %v1981, %v1497
        %v2010 = vmul.f32 %v1988, %v1498
        %v2011 = vmul.f32 %v1995, %v1499
        %v2012 = vsel %vm940, %v1996, 0.0
        %v2013 = vrot.slane %v2012, 4
        %v2014 = vadd.f32 %v2012, %v2013
        %v2015 = vrot.slane %v2014, 2
        %v2016 = vadd.f32 %v2014, %v2015
        %v2017 = vrot.slane %v2016, 1
        %v2018 = vadd.f32 %v2016, %v2017
        %v2019 = vsel %vm940, %v1997, 0.0
        %v2020 = vrot.slane %v2019, 4
        %v2021 = vadd.f32 %v2019, %v2020
        %v2022 = vrot.slane %v2021, 2
        %v2023 = vadd.f32 %v2021, %v2022
        %v2024 = vrot.slane %v2023, 1
        %v2025 = vadd.f32 %v2023, %v2024
        %v2026 = vsel %vm940, %v1998, 0.0
        %v2027 = vrot.slane %v2026, 4
        %v2028 = vadd.f32 %v2026, %v2027
        %v2029 = vrot.slane %v2028, 2
        %v2030 = vadd.f32 %v2028, %v2029
        %v2031 = vrot.slane %v2030, 1
        %v2032 = vadd.f32 %v2030, %v2031
        %v2033 = vsel %vm940, %v1999, 0.0
        %v2034 = vrot.slane %v2033, 4
        %v2035 = vadd.f32 %v2033, %v2034
        %v2036 = vrot.slane %v2035, 2
        %v2037 = vadd.f32 %v2035, %v2036
        %v2038 = vrot.slane %v2037, 1
        %v2039 = vadd.f32 %v2037, %v2038
        %v2040 = vsel %vm940, %v2000, 0.0
        %v2041 = vrot.slane %v2040, 4
        %v2042 = vadd.f32 %v2040, %v2041
        %v2043 = vrot.slane %v2042, 2
        %v2044 = vadd.f32 %v2042, %v2043
        %v2045 = vrot.slane %v2044, 1
        %v2046 = vadd.f32 %v2044, %v2045
        %v2047 = vsel %vm940, %v2001, 0.0
        %v2048 = vrot.slane %v2047, 4
        %v2049 = vadd.f32 %v2047, %v2048
        %v2050 = vrot.slane %v2049, 2
        %v2051 = vadd.f32 %v2049, %v2050
        %v2052 = vrot.slane %v2051, 1
        %v2053 = vadd.f32 %v2051, %v2052
        %v2054 = vsel %vm940, %v2002, 0.0
        %v2055 = vrot.slane %v2054, 4
        %v2056 = vadd.f32 %v2054, %v2055
        %v2057 = vrot.slane %v2056, 2
        %v2058 = vadd.f32 %v2056, %v2057
        %v2059 = vrot.slane %v2058, 1
        %v2060 = vadd.f32 %v2058, %v2059
        %v2061 = vsel %vm940, %v2003, 0.0
        %v2062 = vrot.slane %v2061, 4
        %v2063 = vadd.f32 %v2061, %v2062
        %v2064 = vrot.slane %v2063, 2
        %v2065 = vadd.f32 %v2063, %v2064
        %v2066 = vrot.slane %v2065, 1
        %v2067 = vadd.f32 %v2065, %v2066
        %v2068 = vsel %vm940, %v2004, 0.0
        %v2069 = vrot.slane %v2068, 4
        %v2070 = vadd.f32 %v2068, %v2069
        %v2071 = vrot.slane %v2070, 2
        %v2072 = vadd.f32 %v2070, %v2071
        %v2073 = vrot.slane %v2072, 1
        %v2074 = vadd.f32 %v2072, %v2073
        %v2075 = vsel %vm940, %v2005, 0.0
        %v2076 = vrot.slane %v2075, 4
        %v2077 = vadd.f32 %v2075, %v2076
        %v2078 = vrot.slane %v2077, 2
        %v2079 = vadd.f32 %v2077, %v2078
        %v2080 = vrot.slane %v2079, 1
        %v2081 = vadd.f32 %v2079, %v2080
        %v2082 = vsel %vm940, %v2006, 0.0
        %v2083 = vrot.slane %v2082, 4
        %v2084 = vadd.f32 %v2082, %v2083
        %v2085 = vrot.slane %v2084, 2
        %v2086 = vadd.f32 %v2084, %v2085
        %v2087 = vrot.slane %v2086, 1
        %v2088 = vadd.f32 %v2086, %v2087
        %v2089 = vsel %vm940, %v2007, 0.0
        %v2090 = vrot.slane %v2089, 4
        %v2091 = vadd.f32 %v2089, %v2090
        %v2092 = vrot.slane %v2091, 2
        %v2093 = vadd.f32 %v2091, %v2092
        %v2094 = vrot.slane %v2093, 1
        %v2095 = vadd.f32 %v2093, %v2094
        %v2096 = vsel %vm940, %v2008, 0.0
        %v2097 = vrot.slane %v2096, 4
        %v2098 = vadd.f32 %v2096, %v2097
        %v2099 = vrot.slane %v2098, 2
        %v2100 = vadd.f32 %v2098, %v2099
        %v2101 = vrot.slane %v2100, 1
        %v2102 = vadd.f32 %v2100, %v2101
        %v2103 = vsel %vm940, %v2009, 0.0
        %v2104 = vrot.slane %v2103, 4
        %v2105 = vadd.f32 %v2103, %v2104
        %v2106 = vrot.slane %v2105, 2
        %v2107 = vadd.f32 %v2105, %v2106
        %v2108 = vrot.slane %v2107, 1
        %v2109 = vadd.f32 %v2107, %v2108
        %v2110 = vsel %vm940, %v2010, 0.0
        %v2111 = vrot.slane %v2110, 4
        %v2112 = vadd.f32 %v2110, %v2111
        %v2113 = vrot.slane %v2112, 2
        %v2114 = vadd.f32 %v2112, %v2113
        %v2115 = vrot.slane %v2114, 1
        %v2116 = vadd.f32 %v2114, %v2115
        %v2117 = vsel %vm940, %v2011, 0.0
        %v2118 = vrot.slane %v2117, 4
        %v2119 = vadd.f32 %v2117, %v2118
        %v2120 = vrot.slane %v2119, 2
        %v2121 = vadd.f32 %v2119, %v2120
        %v2122 = vrot.slane %v2121, 1
        %v2123 = vadd.f32 %v2121, %v2122
        %2126 = vrot.lane.b32.xlu0 %v1173, 32
        %v2127 = vpop.permute.xlu0 %2126
        %2128 = vrot.lane.b32.xlu0 %v1174, 32
        %v2129 = vpop.permute.xlu0 %2128
        %2132 = vst.msk [vmem:[#allocation2] sm:$0xff] %vm1002, %v2127
        %2133 = vst.msk [vmem:[#allocation2 + $0x8] sm:$0xff] %vm1002, %v2129
        %2136 = vrot.lane.b32.xlu0 %v1161, 96
        %v2137 = vpop.permute.xlu0 %2136
        %2138 = vrot.lane.b32.xlu0 %v1162, 96
        %v2139 = vpop.permute.xlu0 %2138
        %2142 = vst.msk [vmem:[#allocation3] sm:$0xff] %vm1002, %v2137
        %2143 = vst.msk [vmem:[#allocation3 + $0x8] sm:$0xff] %vm1002, %v2139
        %2146 = vrot.lane.b32.xlu0 %v1363, 32
        %v2147 = vpop.permute.xlu0 %2146
        %2148 = vrot.lane.b32.xlu0 %v1364, 32
        %v2149 = vpop.permute.xlu0 %2148
        %2152 = vst.msk [vmem:[#allocation4] sm:$0xff] %vm1002, %v2147
        %2153 = vst.msk [vmem:[#allocation4 + $0x8] sm:$0xff] %vm1002, %v2149
        %2156 = vrot.lane.b32.xlu0 %v1351, 96
        %v2157 = vpop.permute.xlu0 %2156
        %2158 = vrot.lane.b32.xlu0 %v1352, 96
        %v2159 = vpop.permute.xlu0 %2158
        %2162 = vst.msk [vmem:[#allocation5] sm:$0xff] %vm1002, %v2157
        %2163 = vst.msk [vmem:[#allocation5 + $0x8] sm:$0xff] %vm1002, %v2159
        %v2180 = vsel %vm1836, %v2025, %v2018
        %v2181 = vsel %vm1838, %v2032, %v2180
        %v2182 = vsel %vm1840, %v2039, %v2181
        %v2183 = vsel %vm1842, %v2046, %v2182
        %v2184 = vsel %vm1844, %v2053, %v2183
        %v2185 = vsel %vm1846, %v2060, %v2184
        %v2186 = vsel %vm1848, %v2067, %v2185
        %v2187 = vsel %vm1836, %v2081, %v2074
        %v2188 = vsel %vm1838, %v2088, %v2187
        %v2189 = vsel %vm1840, %v2095, %v2188
        %v2190 = vsel %vm1842, %v2102, %v2189
        %v2191 = vsel %vm1844, %v2109, %v2190
        %v2192 = vsel %vm1846, %v2116, %v2191
        %v2193 = vsel %vm1848, %v2123, %v2192
        %2196 = vst.msk [vmem:[#allocation6] sm:$0xff] %vm940, %v2186
        %2197 = vst.msk [vmem:[#allocation6 + $0x8] sm:$0xff] %vm940, %v2193
        %2198 = vrot.lane.b32.xlu0 %v1430, 112
        %v2199 = vpop.permute.xlu0 %2198
        %2200 = vrot.lane.b32.xlu0 %v1433, 112
        %v2201 = vpop.permute.xlu0 %2200
        %2206 = vrot.lane.b32.xlu0 %v1882, 32
        %v2207 = vpop.permute.xlu0 %2206
        %2208 = vrot.lane.b32.xlu0 %v1883, 32
        %v2209 = vpop.permute.xlu0 %2208
        %v2212 = vsel %vm1002, %v2199, %v2207
        %v2213 = vsel %vm1002, %v2201, %v2209
        %vm2214 = vcmask 326656
        %v2215 = vsel %vm2214, %v2212, 0.0
        %v2216 = vsel %vm2214, %v2213, 0.0
        %2217 = vst [vmem:[%s859] sm:$0xff] %v2215
        %2218 = vst [vmem:[%s859 + $0x8] sm:$0xff] %v2216
        %p2219 = scmp.eq.s32.totalorder %s48, 4
        // Predicated region
        $region137: #{tpu_custom_call.1} parent=91 // pred_check
          %p2220 = pneg %p2219
        $region138: #{tpu_custom_call.1} parent=91 // pred_check_branch
          %2222 = sbr.rel (%p2220) target = $region140
        $region139: #{tpu_custom_call.1} parent=91 // pred_region
          %2223 = vrot.lane.b32.xlu0 %v1363, 64
          %v2224 = vpop.permute.xlu0 %2223
          %2225 = vrot.lane.b32.xlu0 %v1364, 64
          %v2226 = vpop.permute.xlu0 %2225
          %2229 = vrot.lane.b32.xlu0 %v1161, 32
          %v2230 = vpop.permute.xlu0 %2229
          %2231 = vrot.lane.b32.xlu0 %v1162, 32
          %v2232 = vpop.permute.xlu0 %2231
          %2235 = vrot.lane.b32.xlu0 %v1351, 64
          %v2236 = vpop.permute.xlu0 %2235
          %2237 = vrot.lane.b32.xlu0 %v1352, 64
          %v2238 = vpop.permute.xlu0 %2237
          %v2241 = vsel %vm1002, %v2127, %v2224
          %v2242 = vsel %vm1002, %v2129, %v2226
          %vm2243 = vcmask 523264
          %v2244 = vsel %vm2243, %v2241, %v2230
          %v2245 = vsel %vm2243, %v2242, %v2232
          %vm2246 = vcmask 785408
          %v2247 = vsel %vm2246, %v2244, %v2236
          %v2248 = vsel %vm2246, %v2245, %v2238
          %v2249 = vsel %vm940, %v2186, 0.0
          %v2250 = vsel %vm940, %v2193, 0.0
          %2251 = vst [vmem:[#allocation25] sm:$0xff] %v2247
          %2252 = vst [vmem:[#allocation25 + $0x8] sm:$0xff] %v2249
          %2253 = vst [vmem:[#allocation25 + $0x10] sm:$0xff] %v2248
          %2254 = vst [vmem:[#allocation25 + $0x18] sm:$0xff] %v2250
        $region140: #{tpu_custom_call.1} parent=91 // pred_fallthru
          _
        %s2255 = sand.u32 %s490, 1
        %s2256 = scalar_lea.sflag [#allocation9], %s2255
        %s2257 = sand.u32 %s490, 1
        %s2258 = smul.addr %s2257, 16
        %s2259 = scalar_lea.vmem [#allocation24], %s2258
        // Predicated region
        $region141: #{tpu_custom_call.1} parent=91 // pred_check
          %p2260 = pneg %p500
        $region142: #{tpu_custom_call.1} parent=91 // pred_check_branch
          %2262 = sbr.rel (%p2260) target = $region144
        $region143: #{tpu_custom_call.1} parent=91 // pred_region
          %s2263 = smul.u32 2, %s47
          %s2265 = ssub.s32 256, 256
          %2266 = vsyncadd %s2256, %s2265
          %s2267 = smul.addr %s48, 2
          %s2268 = sadd.s32 %s2263, %s2267
          %s2269 = smul.addr %s2268, 128
          %s2270 = scalar_lea.hbm %s18, %s2269
          %s2271 = sshll.u32 %s2259, 4
          %s2272 = int_to_ptr.vmem [resolvable:$true] %s2271
          %2277 = dma.vmem_to_hbm [thread:$0]  %s2272, 256, %s2270, %s2256, 128, 128, 8
        $region144: #{tpu_custom_call.1} parent=91 // pred_fallthru
          _
        // Predicated region
        $region145: #{tpu_custom_call.1} parent=91 // pred_check
          %p2278 = pneg %p526
        $region146: #{tpu_custom_call.1} parent=91 // pred_check_branch
          %2280 = sbr.rel (%p2278) target = $region148
        $region147: #{tpu_custom_call.1} parent=91 // pred_region
          %s2281 = smul.u32 2, %s47
          %s2283 = ssub.s32 512, 512
          %2284 = vsyncadd [#allocation26], %s2283
          %s2285 = smul.addr %s2281, 2
          %s2286 = smul.addr %s2285, 128
          %s2287 = scalar_lea.hbm %s19, %s2286
          %s2288 = sshll.u32 [#allocation25], 4
          %s2289 = int_to_ptr.vmem [resolvable:$true] %s2288
          %2294 = dma.vmem_to_hbm [thread:$0]  %s2289, 512, %s2287, [#allocation26], 256, 256, 16
        $region148: #{tpu_custom_call.1} parent=91 // pred_fallthru
          _
        // Predicated region
        $region149: #{tpu_custom_call.1} parent=91 // pred_check
          %p2295 = pneg %p526
        $region150: #{tpu_custom_call.1} parent=91 // pred_check_branch
          %2297 = sbr.rel (%p2295) target = $region152
        $region151: #{tpu_custom_call.1} parent=91 // pred_region
          %2298 = dma.done [#allocation26], 512
        $region152: #{tpu_custom_call.1} parent=91 // pred_fallthru
          _
      $region92: #{tpu_custom_call.1} parent=5 // pred_fallthru
        _
      %p2299 = scmp.le.s32.totalorder 2, %s38
      // Predicated region
      $region153: #{tpu_custom_call.1} parent=5 // pred_check
        %p2300 = pneg %p2299
      $region154: #{tpu_custom_call.1} parent=5 // pred_check_branch
        %2302 = sbr.rel (%p2300) target = $region156
      $region155: #{tpu_custom_call.1} parent=5 // pred_region
        %s2303 = ssub.s32 %s38, 2
        // Predicated region
        $region157: #{tpu_custom_call.1} parent=155 // pred_check
          %p2304 = pneg %p506
        $region158: #{tpu_custom_call.1} parent=155 // pred_check_branch
          %2306 = sbr.rel (%p2304) target = $region160
        $region159: #{tpu_custom_call.1} parent=155 // pred_region
          %s2307 = sand.u32 %s491, 1
          %s2308 = scalar_lea.sflag [#allocation9], %s2307
          %s2309 = sand.u32 %s491, 1
          %s2310 = smul.addr %s2309, 16
          %s2311 = scalar_lea.vmem [#allocation24], %s2310
          %2312 = dma.done %s2308, 256
        $region160: #{tpu_custom_call.1} parent=155 // pred_fallthru
          _
      $region156: #{tpu_custom_call.1} parent=5 // pred_fallthru
        _
    $region6: #{tpu_custom_call.1} parent=1 // loop_footer
      %s42 = sadd.s32 1, %s38
    $region7: #{tpu_custom_call.1} parent=1 // loop_footer_branch
      %37 = sbr.rel target = $region3
    $region8: #{tpu_custom_call.1} parent=1 // loop_exit
      _
    %2313 = vsyncpa [#allocation8], 1
    %s2314 = scalar_lea.sflag [#allocation8], 1
    %2315 = vsyncpa %s2314, 1
    %2316 = vsyncpa [#allocation11], 1
    %2317 = vsyncpa [#allocation14], 1
    %2318 = vsyncpa [#allocation17], 1
    %2319 = vsyncpa [#allocation20], 1
    %2320 = vsyncpa [#allocation23], 1
    %2321 = vsyncpa [#allocation9], 1
    %s2322 = scalar_lea.sflag [#allocation9], 1
    %2323 = vsyncpa %s2322, 1
    %2324 = vsyncpa [#allocation26], 1

</llo_original>
